<compile_context>
chip_gen: v6e
topology: v6e:2x2x1
jax: 0.10.0
libtpu: 0.0.40
codegen_flags: <defaults>
</compile_context>

<pallas_src>
import functools

import jax
import jax.numpy as jnp
from jax import lax
from jax.experimental import pallas as pl
from jax.experimental.pallas import tpu as pltpu


# ------------------------------- helpers ----------------------------------- #

def _round_up(x, m):
    return ((x + m - 1) // m) * m


def _pad_axis(a, axis, new_size):
    pad = new_size - a.shape[axis]
    if pad <= 0:
        return a
    widths = [(0, 0)] * a.ndim
    widths[axis] = (0, pad)
    return jnp.pad(a, widths)


def _vmem_plan():
    """(max_block_bytes, vmem_limit_bytes) sized per TPU generation."""
    cap = 64 * 1024 * 1024
    try:
        info = pltpu.get_tpu_info()
        cap = int(getattr(info, "vmem_capacity_bytes", cap))
    except Exception:
        pass
    if cap >= 128 * 1024 * 1024:                  # v5e / v6e: 128 MiB physical
        return 8 * 1024 * 1024, 64 * 1024 * 1024
    return 4 * 1024 * 1024, 32 * 1024 * 1024      # v7x: 64 MiB physical per TC


# ----------------------------- Pallas kernel ------------------------------- #

def _rnn_fused_kernel(x_ref, wih_ref, bias_ref, whh_ref, out_ref, h_ref, xp_ref):
    """Fused input-projection + tanh-RNN recurrence for one (batch, time) tile.

    Grid: (num_batch_blocks, num_time_blocks); batch 'parallel', time 'arbitrary'.

    x_ref   : (tT, bB, In)     raw input tile, bf16                  (VMEM)
    wih_ref : (In, Hp)         W_ih^T, zero-padded to Hp lanes, bf16 (VMEM, resident)
    bias_ref: (1, Hp)          b_ih + b_hh, zero-padded, f32         (VMEM, resident)
    whh_ref : (Hp, Hp)         W_hh^T, zero-padded, bf16             (VMEM, resident)
    out_ref : (tT, bB, Hp)     hidden-state outputs, bf16            (VMEM)
    h_ref   : (bB, Hp) f32     hidden carry; persists across time blocks (scratch)
    xp_ref  : (tT, bB, Hp) f32 per-block projected inputs                (scratch)
    """
    t_blk = pl.program_id(1)

    @pl.when(t_blk == 0)
    def _():
        h_ref[...] = jnp.zeros_like(h_ref)

    tT, bB, In = x_ref.shape
    Hp = whh_ref.shape[0]

    # Input projection for the whole time block: one large MXU matmul
    # (bf16 x bf16 -> f32) that fills MXU slack left by the serial recurrence.
    # bB is a multiple of 8, so the leading-dim merge does not cross (8,128) tiles.
    x2 = x_ref[...].reshape(tT * bB, In).astype(jnp.bfloat16)
    xp2 = jnp.dot(x2, wih_ref[...], preferred_element_type=jnp.float32)
    xp_ref[...] = xp2.reshape(tT, bB, Hp) + bias_ref[0]

    whh = whh_ref[...]                             # hoisted; reused every step

    def step(t, h):
        pre = xp_ref[t] + jnp.dot(h.astype(jnp.bfloat16), whh,
                                  preferred_element_type=jnp.float32)
        h_new = jnp.tanh(pre)                      # f32 tanh on the EUP
        out_ref[t] = h_new.astype(out_ref.dtype)   # lane-dense bf16 store
        return h_new                               # hidden state stays in vregs

    h_final = lax.fori_loop(0, tT, step, h_ref[...], unroll=min(8, tT))
    h_ref[...] = h_final                           # spill only at tile boundary


# ----------------------------- layer wrappers ------------------------------ #

def _rnn_layer(x_tm, w_ih, w_hh, b_ih, b_hh):
    """One torch.nn.RNN (tanh) layer. x_tm: (T, B, In) time-major -> (T, B, H) bf16."""
    T, B, In = x_tm.shape
    H = w_ih.shape[0]
    Hp = _round_up(H, 128)

    max_block_bytes, vmem_limit = _vmem_plan()

    # ---- padded weights (zero pad keeps padded h columns exactly 0) --------
    wih_t = _pad_axis(jnp.transpose(w_ih), 1, Hp).astype(jnp.bfloat16)        # (In, Hp)
    whh_t = _pad_axis(_pad_axis(jnp.transpose(w_hh), 0, Hp), 1, Hp)           # (Hp, Hp)
    whh_t = whh_t.astype(jnp.bfloat16)
    bias = _pad_axis((b_ih + b_hh).astype(jnp.float32), 0, Hp).reshape(1, Hp)

    # ---- batch blocking: keep the whole (padded) batch in one block, capped
    # so the carried (bB, Hp) f32 state stays well within the 64 vregs.
    bB_cap = max(8, (((128 * 1024) // (Hp * 4)) // 8) * 8)
    B8 = _round_up(B, 8)
    if B8 <= bB_cap:
        bB, B_pad = B8, B8
    else:
        bB = bB_cap
        B_pad = _round_up(B, bB)
    n_b = B_pad // bB

    # ---- time blocking: size against the VMEM budget, pad T (no divisor search)
    in_lanes = _round_up(In, 128)
    per_t = bB * (2 * in_lanes * 2        # double-buffered x blocks (bf16)
                  + 2 * Hp * 2            # double-buffered out blocks (bf16)
                  + Hp * 4)               # xp f32 scratch
    tT = max(1, min(T, max_block_bytes // max(1, per_t), 512))
    T_pad = pl.cdiv(T, tT) * tT
    n_t = T_pad // tT

    # ---- padded input (bf16 halves the DMA; padded rows/steps sliced off) --
    x_in = _pad_axis(_pad_axis(x_tm.astype(jnp.bfloat16), 0, T_pad), 1, B_pad)

    cost = pl.CostEstimate(
        flops=int(2 * T_pad * B_pad * Hp * (Hp + In) + 2 * T_pad * B_pad * Hp),
        transcendentals=int(T_pad * B_pad * Hp),
        bytes_accessed=int(2 * T_pad * B_pad * (In + Hp)
                           + n_b * 2 * Hp * (Hp + In) + 4 * Hp),
    )

    out_padded = pl.pallas_call(
        _rnn_fused_kernel,
        out_shape=jax.ShapeDtypeStruct((T_pad, B_pad, Hp), jnp.bfloat16),
        grid_spec=pltpu.PrefetchScalarGridSpec(
            num_scalar_prefetch=0,
            grid=(n_b, n_t),
            in_specs=[
                pl.BlockSpec((tT, bB, In), lambda b, t: (t, b, 0)),   # x tile
                pl.BlockSpec((In, Hp), lambda b, t: (0, 0)),          # W_ih^T (resident)
                pl.BlockSpec((1, Hp), lambda b, t: (0, 0)),           # bias   (resident)
                pl.BlockSpec((Hp, Hp), lambda b, t: (0, 0)),          # W_hh^T (resident)
            ],
            out_specs=pl.BlockSpec((tT, bB, Hp), lambda b, t: (t, b, 0)),
            scratch_shapes=[
                pltpu.VMEM((bB, Hp), jnp.float32),        # hidden carry
                pltpu.VMEM((tT, bB, Hp), jnp.float32),    # projected-input block
            ],
        ),
        compiler_params=pltpu.CompilerParams(
            dimension_semantics=("parallel", "arbitrary"),
            vmem_limit_bytes=vmem_limit,
        ),
        cost_estimate=cost,
    )(x_in, wih_t, bias, whh_t)

    return out_padded[:T, :B, :H]


def _rnn_layer_reference(x_tm, w_ih, w_hh, b_ih, b_hh):
    """Pure-JAX reference mirroring the kernel's precision policy
    (bf16 matmul operands, f32 accumulation/tanh/carry, bf16 layer output),
    so the check isolates the Pallas implementation, not the precision choice."""
    T, B, In = x_tm.shape
    H = w_ih.shape[0]
    wih_t = jnp.transpose(w_ih).astype(jnp.bfloat16)
    whh_t = jnp.transpose(w_hh).astype(jnp.bfloat16)
    bias = (b_ih + b_hh).astype(jnp.float32)

    xp = jnp.dot(x_tm.reshape(T * B, In).astype(jnp.bfloat16), wih_t,
                 preferred_element_type=jnp.float32)
    xp = (xp + bias[None, :]).reshape(T, B, H)

    def step(h, xp_t):
        h_new = jnp.tanh(xp_t + jnp.dot(h.astype(jnp.bfloat16), whh_t,
                                        preferred_element_type=jnp.float32))
        return h_new, h_new.astype(jnp.bfloat16)

    _, ys = lax.scan(step, jnp.zeros((B, H), jnp.float32), xp)
    return ys                                             # (T, B, H) bf16


# --------------------------- parameter creation ---------------------------- #

def _init_rnn_params(key, input_size, hidden_size, num_layers):
    """Matches torch.nn.RNN parameter shapes; uniform(-k, k), k = 1/sqrt(hidden)."""
    k = 1.0 / jnp.sqrt(jnp.float32(hidden_size))
    layers = []
    for l in range(num_layers):
        in_sz = input_size if l == 0 else hidden_size
        key, k1, k2, k3, k4 = jax.random.split(key, 5)
        w_ih = jax.random.uniform(k1, (hidden_size, in_sz), jnp.float32, -k, k)
        w_hh = jax.random.uniform(k2, (hidden_size, hidden_size), jnp.float32, -k, k)
        b_ih = jax.random.uniform(k3, (hidden_size,), jnp.float32, -k, k)
        b_hh = jax.random.uniform(k4, (hidden_size,), jnp.float32, -k, k)
        layers.append((w_ih, w_hh, b_ih, b_hh))
    return layers, key


def make_params(key, freq_buckets, sequence_length, freq_size, freq_depth,
                time_size, time_depth):
    freq_size = int(freq_size)
    params = {}
    params["encode_freq"], key = _init_rnn_params(key, freq_buckets, freq_size, freq_depth)
    params["decode_freq"], key = _init_rnn_params(key, freq_size, freq_buckets, freq_depth)
    params["encode_time"], key = _init_rnn_params(key, sequence_length, time_size, time_depth)
    params["decode_time"], key = _init_rnn_params(key, time_size, sequence_length, time_depth)
    return params


# ------------------------------ forward pass ------------------------------- #

def _run_stack(x_bt, layer_params, layer_fn):
    """Stacked tanh RNN, batch_first semantics. x_bt: (B, T, In) -> (B, T, H)."""
    x = jnp.transpose(x_bt, (1, 0, 2))          # time-major (T, B, In)
    for (w_ih, w_hh, b_ih, b_hh) in layer_params:
        x = layer_fn(x, w_ih, w_hh, b_ih, b_hh)
    return jnp.transpose(x, (1, 0, 2))          # back to (B, T, H)


def _forward(x, params, freq_size, time_size, layer_fn):
    """x: (B, freq_buckets, sequence_length) -> same shape (float32)."""
    B = x.shape[0]
    # ---- encode ----
    h = jnp.transpose(x, (0, 2, 1))                          # (B, seq, freq_buckets)
    h = _run_stack(h, params["encode_freq"], layer_fn)       # (B, seq, freq_size)
    h = jnp.transpose(h, (0, 2, 1))                          # (B, freq_size, seq)
    h = _run_stack(h, params["encode_time"], layer_fn)       # (B, freq_size, time_size)
    # periodically_display_2D_output(x): display side-effect only, skipped.
    latent = h.reshape(B, freq_size * time_size)             # flatten(-2)
    # ---- decode ----
    h = latent.reshape(B, freq_size, time_size)
    h = _run_stack(h, params["decode_time"], layer_fn)       # (B, freq_size, seq)
    h = jnp.transpose(h, (0, 2, 1))                          # (B, seq, freq_size)
    h = _run_stack(h, params["decode_freq"], layer_fn)       # (B, seq, freq_buckets)
    return jnp.transpose(h, (0, 2, 1)).astype(jnp.float32)   # (B, freq_buckets, seq)


@functools.partial(jax.jit, static_argnames=("freq_size", "time_size"))
def rnn_freq_and_time_forward(x, params, *, freq_size, time_size):
    return _forward(x, params, freq_size, time_size, _rnn_layer)


@functools.partial(jax.jit, static_argnames=("freq_size", "time_size"))
def rnn_freq_and_time_reference(x, params, *, freq_size, time_size):
    return _forward(x, params, freq_size, time_size, _rnn_layer_reference)


# ---------------------------------- main ----------------------------------- #

if __name__ == "__main__":
    # Small, forward-consistent shapes.
    batch = 2
    freq_buckets = 16
    sequence_length = 8
    freq_size = 8
    freq_depth = 2
    time_size = 4
    time_depth = 2

    key = jax.random.PRNGKey(0)
    key, pkey, xkey = jax.random.split(key, 3)

    params = make_params(pkey, freq_buckets, sequence_length,
                         freq_size, freq_depth, time_size, time_depth)

    x = jax.random.normal(xkey, (batch, freq_buckets, sequence_length), jnp.float32)

    out = rnn_freq_and_time_forward(x, params, freq_size=freq_size, time_size=time_size)
    out = jax.block_until_ready(out)

    assert out.shape == (batch, freq_buckets, sequence_length), out.shape
    assert out.dtype == jnp.float32
    assert bool(jnp.all(jnp.isfinite(out)))

    # Correctness check against a pure-JAX reference using the same precision
    # policy (bf16 matmul operands, f32 accumulation/tanh); only the Pallas
    # recurrence/projection implementation differs.
    ref = rnn_freq_and_time_reference(x, params, freq_size=freq_size, time_size=time_size)
    ref = jax.block_until_ready(ref)
    max_err = float(jnp.max(jnp.abs(out - ref)))
    assert max_err < 2e-2, f"max abs error vs reference: {max_err}"

    print("KERNEL_OK")
</pallas_src>

<mosaic_0001>
module attributes {stable_mosaic.version = 11 : i64} {
  func.func @_rnn_fused_kernel(%arg0: i32, %arg1: i32, %arg2: memref<8x8x16xbf16, #tpu.memory_space<vmem>>, %arg3: memref<16x128xbf16, #tpu.memory_space<vmem>>, %arg4: memref<1x128xf32, #tpu.memory_space<vmem>>, %arg5: memref<128x128xbf16, #tpu.memory_space<vmem>>, %arg6: memref<8x8x128xbf16, #tpu.memory_space<vmem>>, %arg7: memref<8x128xf32, #tpu.memory_space<vmem>>, %arg8: memref<8x8x128xf32, #tpu.memory_space<vmem>>) attributes {dimension_semantics = [#tpu.dimension_semantics<parallel>, #tpu.dimension_semantics<arbitrary>], iteration_bounds = array<i64: 1, 1>, scalar_prefetch = 0 : i64, scratch_operands = 2 : i64, tpu.core_type = #tpu.core_type<tc>, window_params = [{transform_indices = @transform_0, window_bounds = array<i64: 8, 8, 16>}, {pipeline_mode = #tpu.pipeline_mode<synchronous>, transform_indices = @transform_1, window_bounds = array<i64: 16, 128>}, {pipeline_mode = #tpu.pipeline_mode<synchronous>, transform_indices = @transform_2, window_bounds = array<i64: 1, 128>}, {pipeline_mode = #tpu.pipeline_mode<synchronous>, transform_indices = @transform_3, window_bounds = array<i64: 128, 128>}, {transform_indices = @transform_4, window_bounds = array<i64: 8, 8, 128>}]} {
    %c0_i32 = arith.constant 0 : i32
    %0 = arith.cmpi eq, %arg1, %c0_i32 : i32
    %1 = arith.extui %0 : i1 to i32
    %c0_i32_0 = arith.constant 0 : i32
    %2 = arith.cmpi ne, %1, %c0_i32_0 : i32
    scf.if %2 {
      %cst_57 = arith.constant 0.000000e+00 : f32
      %113 = vector.broadcast %cst_57 : f32 to vector<8x128xf32>
      %c0_58 = arith.constant 0 : index
      %c0_59 = arith.constant 0 : index
      %114 = vector.load %arg7[%c0_58, %c0_59] : memref<8x128xf32, #tpu.memory_space<vmem>>, vector<8x128xf32>
      tpu.vector_store %arg7[%c0_58, %c0_59], %113 {strides = array<i32>} : memref<8x128xf32, #tpu.memory_space<vmem>>, vector<8x128xf32>,
    } else {
    }
    %c0 = arith.constant 0 : index
    %c0_1 = arith.constant 0 : index
    %c0_2 = arith.constant 0 : index
    %3 = vector.load %arg2[%c0, %c0_1, %c0_2] : memref<8x8x16xbf16, #tpu.memory_space<vmem>>, vector<8x8x16xbf16>
    %4 = vector.shape_cast %3 : vector<8x8x16xbf16> to vector<64x16xbf16>
    %c0_3 = arith.constant 0 : index
    %c0_4 = arith.constant 0 : index
    %5 = vector.load %arg3[%c0_3, %c0_4] : memref<16x128xbf16, #tpu.memory_space<vmem>>, vector<16x128xbf16>
    %cst = arith.constant dense<0.000000e+00> : vector<64x128xf32>
    %6 = tpu.matmul %4, %5, %cst {dimension_numbers = #tpu.dot_dimension_numbers<[1], [0], [0], [1], [0, 0, 1, 1], [], []>} : vector<64x16xbf16>, vector<16x128xbf16>, vector<64x128xf32> -> vector<64x128xf32>
    %7 = vector.shape_cast %6 : vector<64x128xf32> to vector<8x8x128xf32>
    %c0_5 = arith.constant 0 : index
    %c0_6 = arith.constant 0 : index
    %8 = vector.load %arg4[%c0_5, %c0_6] : memref<1x128xf32, #tpu.memory_space<vmem>>, vector<1x128xf32>
    %9 = vector.shape_cast %8 : vector<1x128xf32> to vector<128xf32>
    %10 = vector.shape_cast %9 : vector<128xf32> to vector<1x1x128xf32>
    %11 = vector.broadcast %10 : vector<1x1x128xf32> to vector<8x8x128xf32>
    %12 = arith.addf %7, %11 : vector<8x8x128xf32>
    %c0_7 = arith.constant 0 : index
    %c0_8 = arith.constant 0 : index
    %c0_9 = arith.constant 0 : index
    %13 = vector.load %arg8[%c0_7, %c0_8, %c0_9] : memref<8x8x128xf32, #tpu.memory_space<vmem>>, vector<8x8x128xf32>
    tpu.vector_store %arg8[%c0_7, %c0_8, %c0_9], %12 {strides = array<i32>} : memref<8x8x128xf32, #tpu.memory_space<vmem>>, vector<8x8x128xf32>,
    %c0_10 = arith.constant 0 : index
    %c0_11 = arith.constant 0 : index
    %14 = vector.load %arg5[%c0_10, %c0_11] : memref<128x128xbf16, #tpu.memory_space<vmem>>, vector<128x128xbf16>
    %c0_12 = arith.constant 0 : index
    %c0_13 = arith.constant 0 : index
    %15 = vector.load %arg7[%c0_12, %c0_13] : memref<8x128xf32, #tpu.memory_space<vmem>>, vector<8x128xf32>
    %c0_i32_14 = arith.constant 0 : i32
    %16 = arith.index_cast %c0_i32_14 : i32 to index
    %c0_15 = arith.constant 0 : index
    %c0_16 = arith.constant 0 : index
    %17 = vector.load %arg8[%16, %c0_15, %c0_16] : memref<8x8x128xf32, #tpu.memory_space<vmem>>, vector<1x8x128xf32>
    %18 = vector.shape_cast %17 : vector<1x8x128xf32> to vector<8x128xf32>
    %19 = arith.truncf %15 : vector<8x128xf32> to vector<8x128xbf16>
    %cst_17 = arith.constant dense<0.000000e+00> : vector<8x128xf32>
    %20 = tpu.matmul %19, %14, %cst_17 {dimension_numbers = #tpu.dot_dimension_numbers<[1], [0], [0], [1], [0, 0, 1, 1], [], []>} : vector<8x128xbf16>, vector<128x128xbf16>, vector<8x128xf32> -> vector<8x128xf32>
    %21 = arith.addf %18, %20 : vector<8x128xf32>
    %22 = math.tanh %21 : vector<8x128xf32>
    %23 = arith.truncf %22 : vector<8x128xf32> to vector<8x128xbf16>
    %24 = arith.index_cast %c0_i32_14 : i32 to index
    %c0_18 = arith.constant 0 : index
    %c0_19 = arith.constant 0 : index
    %25 = vector.load %arg6[%24, %c0_18, %c0_19] : memref<8x8x128xbf16, #tpu.memory_space<vmem>>, vector<1x8x128xbf16>
    %26 = vector.shape_cast %25 : vector<1x8x128xbf16> to vector<8x128xbf16>
    %27 = vector.shape_cast %23 : vector<8x128xbf16> to vector<1x8x128xbf16>
    tpu.vector_store %arg6[%24, %c0_18, %c0_19], %27 {strides = array<i32>} : memref<8x8x128xbf16, #tpu.memory_space<vmem>>, vector<1x8x128xbf16>,
    %c1_i32 = arith.constant 1 : i32
    %28 = arith.index_cast %c1_i32 : i32 to index
    %c0_20 = arith.constant 0 : index
    %c0_21 = arith.constant 0 : index
    %29 = vector.load %arg8[%28, %c0_20, %c0_21] : memref<8x8x128xf32, #tpu.memory_space<vmem>>, vector<1x8x128xf32>
    %30 = vector.shape_cast %29 : vector<1x8x128xf32> to vector<8x128xf32>
    %31 = arith.truncf %22 : vector<8x128xf32> to vector<8x128xbf16>
    %cst_22 = arith.constant dense<0.000000e+00> : vector<8x128xf32>
    %32 = tpu.matmul %31, %14, %cst_22 {dimension_numbers = #tpu.dot_dimension_numbers<[1], [0], [0], [1], [0, 0, 1, 1], [], []>} : vector<8x128xbf16>, vector<128x128xbf16>, vector<8x128xf32> -> vector<8x128xf32>
    %33 = arith.addf %30, %32 : vector<8x128xf32>
    %34 = math.tanh %33 : vector<8x128xf32>
    %35 = arith.truncf %34 : vector<8x128xf32> to vector<8x128xbf16>
    %36 = arith.index_cast %c1_i32 : i32 to index
    %c0_23 = arith.constant 0 : index
    %c0_24 = arith.constant 0 : index
    %37 = vector.load %arg6[%36, %c0_23, %c0_24] : memref<8x8x128xbf16, #tpu.memory_space<vmem>>, vector<1x8x128xbf16>
    %38 = vector.shape_cast %37 : vector<1x8x128xbf16> to vector<8x128xbf16>
    %39 = vector.shape_cast %35 : vector<8x128xbf16> to vector<1x8x128xbf16>
    tpu.vector_store %arg6[%36, %c0_23, %c0_24], %39 {strides = array<i32>} : memref<8x8x128xbf16, #tpu.memory_space<vmem>>, vector<1x8x128xbf16>,
    %c2_i32 = arith.constant 2 : i32
    %40 = arith.index_cast %c2_i32 : i32 to index
    %c0_25 = arith.constant 0 : index
    %c0_26 = arith.constant 0 : index
    %41 = vector.load %arg8[%40, %c0_25, %c0_26] : memref<8x8x128xf32, #tpu.memory_space<vmem>>, vector<1x8x128xf32>
    %42 = vector.shape_cast %41 : vector<1x8x128xf32> to vector<8x128xf32>
    %43 = arith.truncf %34 : vector<8x128xf32> to vector<8x128xbf16>
    %cst_27 = arith.constant dense<0.000000e+00> : vector<8x128xf32>
    %44 = tpu.matmul %43, %14, %cst_27 {dimension_numbers = #tpu.dot_dimension_numbers<[1], [0], [0], [1], [0, 0, 1, 1], [], []>} : vector<8x128xbf16>, vector<128x128xbf16>, vector<8x128xf32> -> vector<8x128xf32>
    %45 = arith.addf %42, %44 : vector<8x128xf32>
    %46 = math.tanh %45 : vector<8x128xf32>
    %47 = arith.truncf %46 : vector<8x128xf32> to vector<8x128xbf16>
    %48 = arith.index_cast %c2_i32 : i32 to index
    %c0_28 = arith.constant 0 : index
    %c0_29 = arith.constant 0 : index
    %49 = vector.load %arg6[%48, %c0_28, %c0_29] : memref<8x8x128xbf16, #tpu.memory_space<vmem>>, vector<1x8x128xbf16>
    %50 = vector.shape_cast %49 : vector<1x8x128xbf16> to vector<8x128xbf16>
    %51 = vector.shape_cast %47 : vector<8x128xbf16> to vector<1x8x128xbf16>
    tpu.vector_store %arg6[%48, %c0_28, %c0_29], %51 {strides = array<i32>} : memref<8x8x128xbf16, #tpu.memory_space<vmem>>, vector<1x8x128xbf16>,
    %c3_i32 = arith.constant 3 : i32
    %52 = arith.index_cast %c3_i32 : i32 to index
    %c0_30 = arith.constant 0 : index
    %c0_31 = arith.constant 0 : index
    %53 = vector.load %arg8[%52, %c0_30, %c0_31] : memref<8x8x128xf32, #tpu.memory_space<vmem>>, vector<1x8x128xf32>
    %54 = vector.shape_cast %53 : vector<1x8x128xf32> to vector<8x128xf32>
    %55 = arith.truncf %46 : vector<8x128xf32> to vector<8x128xbf16>
    %cst_32 = arith.constant dense<0.000000e+00> : vector<8x128xf32>
    %56 = tpu.matmul %55, %14, %cst_32 {dimension_numbers = #tpu.dot_dimension_numbers<[1], [0], [0], [1], [0, 0, 1, 1], [], []>} : vector<8x128xbf16>, vector<128x128xbf16>, vector<8x128xf32> -> vector<8x128xf32>
    %57 = arith.addf %54, %56 : vector<8x128xf32>
    %58 = math.tanh %57 : vector<8x128xf32>
    %59 = arith.truncf %58 : vector<8x128xf32> to vector<8x128xbf16>
    %60 = arith.index_cast %c3_i32 : i32 to index
    %c0_33 = arith.constant 0 : index
    %c0_34 = arith.constant 0 : index
    %61 = vector.load %arg6[%60, %c0_33, %c0_34] : memref<8x8x128xbf16, #tpu.memory_space<vmem>>, vector<1x8x128xbf16>
    %62 = vector.shape_cast %61 : vector<1x8x128xbf16> to vector<8x128xbf16>
    %63 = vector.shape_cast %59 : vector<8x128xbf16> to vector<1x8x128xbf16>
    tpu.vector_store %arg6[%60, %c0_33, %c0_34], %63 {strides = array<i32>} : memref<8x8x128xbf16, #tpu.memory_space<vmem>>, vector<1x8x128xbf16>,
    %c4_i32 = arith.constant 4 : i32
    %64 = arith.index_cast %c4_i32 : i32 to index
    %c0_35 = arith.constant 0 : index
    %c0_36 = arith.constant 0 : index
    %65 = vector.load %arg8[%64, %c0_35, %c0_36] : memref<8x8x128xf32, #tpu.memory_space<vmem>>, vector<1x8x128xf32>
    %66 = vector.shape_cast %65 : vector<1x8x128xf32> to vector<8x128xf32>
    %67 = arith.truncf %58 : vector<8x128xf32> to vector<8x128xbf16>
    %cst_37 = arith.constant dense<0.000000e+00> : vector<8x128xf32>
    %68 = tpu.matmul %67, %14, %cst_37 {dimension_numbers = #tpu.dot_dimension_numbers<[1], [0], [0], [1], [0, 0, 1, 1], [], []>} : vector<8x128xbf16>, vector<128x128xbf16>, vector<8x128xf32> -> vector<8x128xf32>
    %69 = arith.addf %66, %68 : vector<8x128xf32>
    %70 = math.tanh %69 : vector<8x128xf32>
    %71 = arith.truncf %70 : vector<8x128xf32> to vector<8x128xbf16>
    %72 = arith.index_cast %c4_i32 : i32 to index
    %c0_38 = arith.constant 0 : index
    %c0_39 = arith.constant 0 : index
    %73 = vector.load %arg6[%72, %c0_38, %c0_39] : memref<8x8x128xbf16, #tpu.memory_space<vmem>>, vector<1x8x128xbf16>
    %74 = vector.shape_cast %73 : vector<1x8x128xbf16> to vector<8x128xbf16>
    %75 = vector.shape_cast %71 : vector<8x128xbf16> to vector<1x8x128xbf16>
    tpu.vector_store %arg6[%72, %c0_38, %c0_39], %75 {strides = array<i32>} : memref<8x8x128xbf16, #tpu.memory_space<vmem>>, vector<1x8x128xbf16>,
    %c5_i32 = arith.constant 5 : i32
    %76 = arith.index_cast %c5_i32 : i32 to index
    %c0_40 = arith.constant 0 : index
    %c0_41 = arith.constant 0 : index
    %77 = vector.load %arg8[%76, %c0_40, %c0_41] : memref<8x8x128xf32, #tpu.memory_space<vmem>>, vector<1x8x128xf32>
    %78 = vector.shape_cast %77 : vector<1x8x128xf32> to vector<8x128xf32>
    %79 = arith.truncf %70 : vector<8x128xf32> to vector<8x128xbf16>
    %cst_42 = arith.constant dense<0.000000e+00> : vector<8x128xf32>
    %80 = tpu.matmul %79, %14, %cst_42 {dimension_numbers = #tpu.dot_dimension_numbers<[1], [0], [0], [1], [0, 0, 1, 1], [], []>} : vector<8x128xbf16>, vector<128x128xbf16>, vector<8x128xf32> -> vector<8x128xf32>
    %81 = arith.addf %78, %80 : vector<8x128xf32>
    %82 = math.tanh %81 : vector<8x128xf32>
    %83 = arith.truncf %82 : vector<8x128xf32> to vector<8x128xbf16>
    %84 = arith.index_cast %c5_i32 : i32 to index
    %c0_43 = arith.constant 0 : index
    %c0_44 = arith.constant 0 : index
    %85 = vector.load %arg6[%84, %c0_43, %c0_44] : memref<8x8x128xbf16, #tpu.memory_space<vmem>>, vector<1x8x128xbf16>
    %86 = vector.shape_cast %85 : vector<1x8x128xbf16> to vector<8x128xbf16>
    %87 = vector.shape_cast %83 : vector<8x128xbf16> to vector<1x8x128xbf16>
    tpu.vector_store %arg6[%84, %c0_43, %c0_44], %87 {strides = array<i32>} : memref<8x8x128xbf16, #tpu.memory_space<vmem>>, vector<1x8x128xbf16>,
    %c6_i32 = arith.constant 6 : i32
    %88 = arith.index_cast %c6_i32 : i32 to index
    %c0_45 = arith.constant 0 : index
    %c0_46 = arith.constant 0 : index
    %89 = vector.load %arg8[%88, %c0_45, %c0_46] : memref<8x8x128xf32, #tpu.memory_space<vmem>>, vector<1x8x128xf32>
    %90 = vector.shape_cast %89 : vector<1x8x128xf32> to vector<8x128xf32>
    %91 = arith.truncf %82 : vector<8x128xf32> to vector<8x128xbf16>
    %cst_47 = arith.constant dense<0.000000e+00> : vector<8x128xf32>
    %92 = tpu.matmul %91, %14, %cst_47 {dimension_numbers = #tpu.dot_dimension_numbers<[1], [0], [0], [1], [0, 0, 1, 1], [], []>} : vector<8x128xbf16>, vector<128x128xbf16>, vector<8x128xf32> -> vector<8x128xf32>
    %93 = arith.addf %90, %92 : vector<8x128xf32>
    %94 = math.tanh %93 : vector<8x128xf32>
    %95 = arith.truncf %94 : vector<8x128xf32> to vector<8x128xbf16>
    %96 = arith.index_cast %c6_i32 : i32 to index
    %c0_48 = arith.constant 0 : index
    %c0_49 = arith.constant 0 : index
    %97 = vector.load %arg6[%96, %c0_48, %c0_49] : memref<8x8x128xbf16, #tpu.memory_space<vmem>>, vector<1x8x128xbf16>
    %98 = vector.shape_cast %97 : vector<1x8x128xbf16> to vector<8x128xbf16>
    %99 = vector.shape_cast %95 : vector<8x128xbf16> to vector<1x8x128xbf16>
    tpu.vector_store %arg6[%96, %c0_48, %c0_49], %99 {strides = array<i32>} : memref<8x8x128xbf16, #tpu.memory_space<vmem>>, vector<1x8x128xbf16>,
    %c7_i32 = arith.constant 7 : i32
    %100 = arith.index_cast %c7_i32 : i32 to index
    %c0_50 = arith.constant 0 : index
    %c0_51 = arith.constant 0 : index
    %101 = vector.load %arg8[%100, %c0_50, %c0_51] : memref<8x8x128xf32, #tpu.memory_space<vmem>>, vector<1x8x128xf32>
    %102 = vector.shape_cast %101 : vector<1x8x128xf32> to vector<8x128xf32>
    %103 = arith.truncf %94 : vector<8x128xf32> to vector<8x128xbf16>
    %cst_52 = arith.constant dense<0.000000e+00> : vector<8x128xf32>
    %104 = tpu.matmul %103, %14, %cst_52 {dimension_numbers = #tpu.dot_dimension_numbers<[1], [0], [0], [1], [0, 0, 1, 1], [], []>} : vector<8x128xbf16>, vector<128x128xbf16>, vector<8x128xf32> -> vector<8x128xf32>
    %105 = arith.addf %102, %104 : vector<8x128xf32>
    %106 = math.tanh %105 : vector<8x128xf32>
    %107 = arith.truncf %106 : vector<8x128xf32> to vector<8x128xbf16>
    %108 = arith.index_cast %c7_i32 : i32 to index
    %c0_53 = arith.constant 0 : index
    %c0_54 = arith.constant 0 : index
    %109 = vector.load %arg6[%108, %c0_53, %c0_54] : memref<8x8x128xbf16, #tpu.memory_space<vmem>>, vector<1x8x128xbf16>
    %110 = vector.shape_cast %109 : vector<1x8x128xbf16> to vector<8x128xbf16>
    %111 = vector.shape_cast %107 : vector<8x128xbf16> to vector<1x8x128xbf16>
    tpu.vector_store %arg6[%108, %c0_53, %c0_54], %111 {strides = array<i32>} : memref<8x8x128xbf16, #tpu.memory_space<vmem>>, vector<1x8x128xbf16>,
    %c8_i32 = arith.constant 8 : i32
    %c0_55 = arith.constant 0 : index
    %c0_56 = arith.constant 0 : index
    %112 = vector.load %arg7[%c0_55, %c0_56] : memref<8x128xf32, #tpu.memory_space<vmem>>, vector<8x128xf32>
    tpu.vector_store %arg7[%c0_55, %c0_56], %106 {strides = array<i32>} : memref<8x128xf32, #tpu.memory_space<vmem>>, vector<8x128xf32>,
    return
  }
  func.func @transform_0(%arg0: i32, %arg1: i32) -> (i32, i32, i32) {
    %c0_i32 = arith.constant 0 : i32
    %c0_i32_0 = arith.constant 0 : i32
    return %arg1, %arg0, %c0_i32 : i32, i32, i32
  }
  func.func @transform_1(%arg0: i32, %arg1: i32) -> (i32, i32) {
    %c0_i32 = arith.constant 0 : i32
    %c0_i32_0 = arith.constant 0 : i32
    %c0_i32_1 = arith.constant 0 : i32
    return %c0_i32, %c0_i32_0 : i32, i32
  }
  func.func @transform_2(%arg0: i32, %arg1: i32) -> (i32, i32) {
    %c0_i32 = arith.constant 0 : i32
    %c0_i32_0 = arith.constant 0 : i32
    %c0_i32_1 = arith.constant 0 : i32
    return %c0_i32, %c0_i32_0 : i32, i32
  }
  func.func @transform_3(%arg0: i32, %arg1: i32) -> (i32, i32) {
    %c0_i32 = arith.constant 0 : i32
    %c0_i32_0 = arith.constant 0 : i32
    %c0_i32_1 = arith.constant 0 : i32
    return %c0_i32, %c0_i32_0 : i32, i32
  }
  func.func @transform_4(%arg0: i32, %arg1: i32) -> (i32, i32, i32) {
    %c0_i32 = arith.constant 0 : i32
    %c0_i32_0 = arith.constant 0 : i32
    return %arg1, %arg0, %c0_i32 : i32, i32, i32
  }
}

module attributes {stable_mosaic.version = 11 : i64} {
  func.func @_rnn_fused_kernel(%arg0: i32, %arg1: i32, %arg2: memref<8x8x8xbf16, #tpu.memory_space<vmem>>, %arg3: memref<8x128xbf16, #tpu.memory_space<vmem>>, %arg4: memref<1x128xf32, #tpu.memory_space<vmem>>, %arg5: memref<128x128xbf16, #tpu.memory_space<vmem>>, %arg6: memref<8x8x128xbf16, #tpu.memory_space<vmem>>, %arg7: memref<8x128xf32, #tpu.memory_space<vmem>>, %arg8: memref<8x8x128xf32, #tpu.memory_space<vmem>>) attributes {dimension_semantics = [#tpu.dimension_semantics<parallel>, #tpu.dimension_semantics<arbitrary>], iteration_bounds = array<i64: 1, 1>, scalar_prefetch = 0 : i64, scratch_operands = 2 : i64, tpu.core_type = #tpu.core_type<tc>, window_params = [{transform_indices = @transform_0, window_bounds = array<i64: 8, 8, 8>}, {pipeline_mode = #tpu.pipeline_mode<synchronous>, transform_indices = @transform_1, window_bounds = array<i64: 8, 128>}, {pipeline_mode = #tpu.pipeline_mode<synchronous>, transform_indices = @transform_2, window_bounds = array<i64: 1, 128>}, {pipeline_mode = #tpu.pipeline_mode<synchronous>, transform_indices = @transform_3, window_bounds = array<i64: 128, 128>}, {transform_indices = @transform_4, window_bounds = array<i64: 8, 8, 128>}]} {
    %c0_i32 = arith.constant 0 : i32
    %0 = arith.cmpi eq, %arg1, %c0_i32 : i32
    %1 = arith.extui %0 : i1 to i32
    %c0_i32_0 = arith.constant 0 : i32
    %2 = arith.cmpi ne, %1, %c0_i32_0 : i32
    scf.if %2 {
      %cst_57 = arith.constant 0.000000e+00 : f32
      %113 = vector.broadcast %cst_57 : f32 to vector<8x128xf32>
      %c0_58 = arith.constant 0 : index
      %c0_59 = arith.constant 0 : index
      %114 = vector.load %arg7[%c0_58, %c0_59] : memref<8x128xf32, #tpu.memory_space<vmem>>, vector<8x128xf32>
      tpu.vector_store %arg7[%c0_58, %c0_59], %113 {strides = array<i32>} : memref<8x128xf32, #tpu.memory_space<vmem>>, vector<8x128xf32>,
    } else {
    }
    %c0 = arith.constant 0 : index
    %c0_1 = arith.constant 0 : index
    %c0_2 = arith.constant 0 : index
    %3 = vector.load %arg2[%c0, %c0_1, %c0_2] : memref<8x8x8xbf16, #tpu.memory_space<vmem>>, vector<8x8x8xbf16>
    %4 = vector.shape_cast %3 : vector<8x8x8xbf16> to vector<64x8xbf16>
    %c0_3 = arith.constant 0 : index
    %c0_4 = arith.constant 0 : index
    %5 = vector.load %arg3[%c0_3, %c0_4] : memref<8x128xbf16, #tpu.memory_space<vmem>>, vector<8x128xbf16>
    %cst = arith.constant dense<0.000000e+00> : vector<64x128xf32>
    %6 = tpu.matmul %4, %5, %cst {dimension_numbers = #tpu.dot_dimension_numbers<[1], [0], [0], [1], [0, 0, 1, 1], [], []>} : vector<64x8xbf16>, vector<8x128xbf16>, vector<64x128xf32> -> vector<64x128xf32>
    %7 = vector.shape_cast %6 : vector<64x128xf32> to vector<8x8x128xf32>
    %c0_5 = arith.constant 0 : index
    %c0_6 = arith.constant 0 : index
    %8 = vector.load %arg4[%c0_5, %c0_6] : memref<1x128xf32, #tpu.memory_space<vmem>>, vector<1x128xf32>
    %9 = vector.shape_cast %8 : vector<1x128xf32> to vector<128xf32>
    %10 = vector.shape_cast %9 : vector<128xf32> to vector<1x1x128xf32>
    %11 = vector.broadcast %10 : vector<1x1x128xf32> to vector<8x8x128xf32>
    %12 = arith.addf %7, %11 : vector<8x8x128xf32>
    %c0_7 = arith.constant 0 : index
    %c0_8 = arith.constant 0 : index
    %c0_9 = arith.constant 0 : index
    %13 = vector.load %arg8[%c0_7, %c0_8, %c0_9] : memref<8x8x128xf32, #tpu.memory_space<vmem>>, vector<8x8x128xf32>
    tpu.vector_store %arg8[%c0_7, %c0_8, %c0_9], %12 {strides = array<i32>} : memref<8x8x128xf32, #tpu.memory_space<vmem>>, vector<8x8x128xf32>,
    %c0_10 = arith.constant 0 : index
    %c0_11 = arith.constant 0 : index
    %14 = vector.load %arg5[%c0_10, %c0_11] : memref<128x128xbf16, #tpu.memory_space<vmem>>, vector<128x128xbf16>
    %c0_12 = arith.constant 0 : index
    %c0_13 = arith.constant 0 : index
    %15 = vector.load %arg7[%c0_12, %c0_13] : memref<8x128xf32, #tpu.memory_space<vmem>>, vector<8x128xf32>
    %c0_i32_14 = arith.constant 0 : i32
    %16 = arith.index_cast %c0_i32_14 : i32 to index
    %c0_15 = arith.constant 0 : index
    %c0_16 = arith.constant 0 : index
    %17 = vector.load %arg8[%16, %c0_15, %c0_16] : memref<8x8x128xf32, #tpu.memory_space<vmem>>, vector<1x8x128xf32>
    %18 = vector.shape_cast %17 : vector<1x8x128xf32> to vector<8x128xf32>
    %19 = arith.truncf %15 : vector<8x128xf32> to vector<8x128xbf16>
    %cst_17 = arith.constant dense<0.000000e+00> : vector<8x128xf32>
    %20 = tpu.matmul %19, %14, %cst_17 {dimension_numbers = #tpu.dot_dimension_numbers<[1], [0], [0], [1], [0, 0, 1, 1], [], []>} : vector<8x128xbf16>, vector<128x128xbf16>, vector<8x128xf32> -> vector<8x128xf32>
    %21 = arith.addf %18, %20 : vector<8x128xf32>
    %22 = math.tanh %21 : vector<8x128xf32>
    %23 = arith.truncf %22 : vector<8x128xf32> to vector<8x128xbf16>
    %24 = arith.index_cast %c0_i32_14 : i32 to index
    %c0_18 = arith.constant 0 : index
    %c0_19 = arith.constant 0 : index
    %25 = vector.load %arg6[%24, %c0_18, %c0_19] : memref<8x8x128xbf16, #tpu.memory_space<vmem>>, vector<1x8x128xbf16>
    %26 = vector.shape_cast %25 : vector<1x8x128xbf16> to vector<8x128xbf16>
    %27 = vector.shape_cast %23 : vector<8x128xbf16> to vector<1x8x128xbf16>
    tpu.vector_store %arg6[%24, %c0_18, %c0_19], %27 {strides = array<i32>} : memref<8x8x128xbf16, #tpu.memory_space<vmem>>, vector<1x8x128xbf16>,
    %c1_i32 = arith.constant 1 : i32
    %28 = arith.index_cast %c1_i32 : i32 to index
    %c0_20 = arith.constant 0 : index
    %c0_21 = arith.constant 0 : index
    %29 = vector.load %arg8[%28, %c0_20, %c0_21] : memref<8x8x128xf32, #tpu.memory_space<vmem>>, vector<1x8x128xf32>
    %30 = vector.shape_cast %29 : vector<1x8x128xf32> to vector<8x128xf32>
    %31 = arith.truncf %22 : vector<8x128xf32> to vector<8x128xbf16>
    %cst_22 = arith.constant dense<0.000000e+00> : vector<8x128xf32>
    %32 = tpu.matmul %31, %14, %cst_22 {dimension_numbers = #tpu.dot_dimension_numbers<[1], [0], [0], [1], [0, 0, 1, 1], [], []>} : vector<8x128xbf16>, vector<128x128xbf16>, vector<8x128xf32> -> vector<8x128xf32>
    %33 = arith.addf %30, %32 : vector<8x128xf32>
    %34 = math.tanh %33 : vector<8x128xf32>
    %35 = arith.truncf %34 : vector<8x128xf32> to vector<8x128xbf16>
    %36 = arith.index_cast %c1_i32 : i32 to index
    %c0_23 = arith.constant 0 : index
    %c0_24 = arith.constant 0 : index
    %37 = vector.load %arg6[%36, %c0_23, %c0_24] : memref<8x8x128xbf16, #tpu.memory_space<vmem>>, vector<1x8x128xbf16>
    %38 = vector.shape_cast %37 : vector<1x8x128xbf16> to vector<8x128xbf16>
    %39 = vector.shape_cast %35 : vector<8x128xbf16> to vector<1x8x128xbf16>
    tpu.vector_store %arg6[%36, %c0_23, %c0_24], %39 {strides = array<i32>} : memref<8x8x128xbf16, #tpu.memory_space<vmem>>, vector<1x8x128xbf16>,
    %c2_i32 = arith.constant 2 : i32
    %40 = arith.index_cast %c2_i32 : i32 to index
    %c0_25 = arith.constant 0 : index
    %c0_26 = arith.constant 0 : index
    %41 = vector.load %arg8[%40, %c0_25, %c0_26] : memref<8x8x128xf32, #tpu.memory_space<vmem>>, vector<1x8x128xf32>
    %42 = vector.shape_cast %41 : vector<1x8x128xf32> to vector<8x128xf32>
    %43 = arith.truncf %34 : vector<8x128xf32> to vector<8x128xbf16>
    %cst_27 = arith.constant dense<0.000000e+00> : vector<8x128xf32>
    %44 = tpu.matmul %43, %14, %cst_27 {dimension_numbers = #tpu.dot_dimension_numbers<[1], [0], [0], [1], [0, 0, 1, 1], [], []>} : vector<8x128xbf16>, vector<128x128xbf16>, vector<8x128xf32> -> vector<8x128xf32>
    %45 = arith.addf %42, %44 : vector<8x128xf32>
    %46 = math.tanh %45 : vector<8x128xf32>
    %47 = arith.truncf %46 : vector<8x128xf32> to vector<8x128xbf16>
    %48 = arith.index_cast %c2_i32 : i32 to index
    %c0_28 = arith.constant 0 : index
    %c0_29 = arith.constant 0 : index
    %49 = vector.load %arg6[%48, %c0_28, %c0_29] : memref<8x8x128xbf16, #tpu.memory_space<vmem>>, vector<1x8x128xbf16>
    %50 = vector.shape_cast %49 : vector<1x8x128xbf16> to vector<8x128xbf16>
    %51 = vector.shape_cast %47 : vector<8x128xbf16> to vector<1x8x128xbf16>
    tpu.vector_store %arg6[%48, %c0_28, %c0_29], %51 {strides = array<i32>} : memref<8x8x128xbf16, #tpu.memory_space<vmem>>, vector<1x8x128xbf16>,
    %c3_i32 = arith.constant 3 : i32
    %52 = arith.index_cast %c3_i32 : i32 to index
    %c0_30 = arith.constant 0 : index
    %c0_31 = arith.constant 0 : index
    %53 = vector.load %arg8[%52, %c0_30, %c0_31] : memref<8x8x128xf32, #tpu.memory_space<vmem>>, vector<1x8x128xf32>
    %54 = vector.shape_cast %53 : vector<1x8x128xf32> to vector<8x128xf32>
    %55 = arith.truncf %46 : vector<8x128xf32> to vector<8x128xbf16>
    %cst_32 = arith.constant dense<0.000000e+00> : vector<8x128xf32>
    %56 = tpu.matmul %55, %14, %cst_32 {dimension_numbers = #tpu.dot_dimension_numbers<[1], [0], [0], [1], [0, 0, 1, 1], [], []>} : vector<8x128xbf16>, vector<128x128xbf16>, vector<8x128xf32> -> vector<8x128xf32>
    %57 = arith.addf %54, %56 : vector<8x128xf32>
    %58 = math.tanh %57 : vector<8x128xf32>
    %59 = arith.truncf %58 : vector<8x128xf32> to vector<8x128xbf16>
    %60 = arith.index_cast %c3_i32 : i32 to index
    %c0_33 = arith.constant 0 : index
    %c0_34 = arith.constant 0 : index
    %61 = vector.load %arg6[%60, %c0_33, %c0_34] : memref<8x8x128xbf16, #tpu.memory_space<vmem>>, vector<1x8x128xbf16>
    %62 = vector.shape_cast %61 : vector<1x8x128xbf16> to vector<8x128xbf16>
    %63 = vector.shape_cast %59 : vector<8x128xbf16> to vector<1x8x128xbf16>
    tpu.vector_store %arg6[%60, %c0_33, %c0_34], %63 {strides = array<i32>} : memref<8x8x128xbf16, #tpu.memory_space<vmem>>, vector<1x8x128xbf16>,
    %c4_i32 = arith.constant 4 : i32
    %64 = arith.index_cast %c4_i32 : i32 to index
    %c0_35 = arith.constant 0 : index
    %c0_36 = arith.constant 0 : index
    %65 = vector.load %arg8[%64, %c0_35, %c0_36] : memref<8x8x128xf32, #tpu.memory_space<vmem>>, vector<1x8x128xf32>
    %66 = vector.shape_cast %65 : vector<1x8x128xf32> to vector<8x128xf32>
    %67 = arith.truncf %58 : vector<8x128xf32> to vector<8x128xbf16>
    %cst_37 = arith.constant dense<0.000000e+00> : vector<8x128xf32>
    %68 = tpu.matmul %67, %14, %cst_37 {dimension_numbers = #tpu.dot_dimension_numbers<[1], [0], [0], [1], [0, 0, 1, 1], [], []>} : vector<8x128xbf16>, vector<128x128xbf16>, vector<8x128xf32> -> vector<8x128xf32>
    %69 = arith.addf %66, %68 : vector<8x128xf32>
    %70 = math.tanh %69 : vector<8x128xf32>
    %71 = arith.truncf %70 : vector<8x128xf32> to vector<8x128xbf16>
    %72 = arith.index_cast %c4_i32 : i32 to index
    %c0_38 = arith.constant 0 : index
    %c0_39 = arith.constant 0 : index
    %73 = vector.load %arg6[%72, %c0_38, %c0_39] : memref<8x8x128xbf16, #tpu.memory_space<vmem>>, vector<1x8x128xbf16>
    %74 = vector.shape_cast %73 : vector<1x8x128xbf16> to vector<8x128xbf16>
    %75 = vector.shape_cast %71 : vector<8x128xbf16> to vector<1x8x128xbf16>
    tpu.vector_store %arg6[%72, %c0_38, %c0_39], %75 {strides = array<i32>} : memref<8x8x128xbf16, #tpu.memory_space<vmem>>, vector<1x8x128xbf16>,
    %c5_i32 = arith.constant 5 : i32
    %76 = arith.index_cast %c5_i32 : i32 to index
    %c0_40 = arith.constant 0 : index
    %c0_41 = arith.constant 0 : index
    %77 = vector.load %arg8[%76, %c0_40, %c0_41] : memref<8x8x128xf32, #tpu.memory_space<vmem>>, vector<1x8x128xf32>
    %78 = vector.shape_cast %77 : vector<1x8x128xf32> to vector<8x128xf32>
    %79 = arith.truncf %70 : vector<8x128xf32> to vector<8x128xbf16>
    %cst_42 = arith.constant dense<0.000000e+00> : vector<8x128xf32>
    %80 = tpu.matmul %79, %14, %cst_42 {dimension_numbers = #tpu.dot_dimension_numbers<[1], [0], [0], [1], [0, 0, 1, 1], [], []>} : vector<8x128xbf16>, vector<128x128xbf16>, vector<8x128xf32> -> vector<8x128xf32>
    %81 = arith.addf %78, %80 : vector<8x128xf32>
    %82 = math.tanh %81 : vector<8x128xf32>
    %83 = arith.truncf %82 : vector<8x128xf32> to vector<8x128xbf16>
    %84 = arith.index_cast %c5_i32 : i32 to index
    %c0_43 = arith.constant 0 : index
    %c0_44 = arith.constant 0 : index
    %85 = vector.load %arg6[%84, %c0_43, %c0_44] : memref<8x8x128xbf16, #tpu.memory_space<vmem>>, vector<1x8x128xbf16>
    %86 = vector.shape_cast %85 : vector<1x8x128xbf16> to vector<8x128xbf16>
    %87 = vector.shape_cast %83 : vector<8x128xbf16> to vector<1x8x128xbf16>
    tpu.vector_store %arg6[%84, %c0_43, %c0_44], %87 {strides = array<i32>} : memref<8x8x128xbf16, #tpu.memory_space<vmem>>, vector<1x8x128xbf16>,
    %c6_i32 = arith.constant 6 : i32
    %88 = arith.index_cast %c6_i32 : i32 to index
    %c0_45 = arith.constant 0 : index
    %c0_46 = arith.constant 0 : index
    %89 = vector.load %arg8[%88, %c0_45, %c0_46] : memref<8x8x128xf32, #tpu.memory_space<vmem>>, vector<1x8x128xf32>
    %90 = vector.shape_cast %89 : vector<1x8x128xf32> to vector<8x128xf32>
    %91 = arith.truncf %82 : vector<8x128xf32> to vector<8x128xbf16>
    %cst_47 = arith.constant dense<0.000000e+00> : vector<8x128xf32>
    %92 = tpu.matmul %91, %14, %cst_47 {dimension_numbers = #tpu.dot_dimension_numbers<[1], [0], [0], [1], [0, 0, 1, 1], [], []>} : vector<8x128xbf16>, vector<128x128xbf16>, vector<8x128xf32> -> vector<8x128xf32>
    %93 = arith.addf %90, %92 : vector<8x128xf32>
    %94 = math.tanh %93 : vector<8x128xf32>
    %95 = arith.truncf %94 : vector<8x128xf32> to vector<8x128xbf16>
    %96 = arith.index_cast %c6_i32 : i32 to index
    %c0_48 = arith.constant 0 : index
    %c0_49 = arith.constant 0 : index
    %97 = vector.load %arg6[%96, %c0_48, %c0_49] : memref<8x8x128xbf16, #tpu.memory_space<vmem>>, vector<1x8x128xbf16>
    %98 = vector.shape_cast %97 : vector<1x8x128xbf16> to vector<8x128xbf16>
    %99 = vector.shape_cast %95 : vector<8x128xbf16> to vector<1x8x128xbf16>
    tpu.vector_store %arg6[%96, %c0_48, %c0_49], %99 {strides = array<i32>} : memref<8x8x128xbf16, #tpu.memory_space<vmem>>, vector<1x8x128xbf16>,
    %c7_i32 = arith.constant 7 : i32
    %100 = arith.index_cast %c7_i32 : i32 to index
    %c0_50 = arith.constant 0 : index
    %c0_51 = arith.constant 0 : index
    %101 = vector.load %arg8[%100, %c0_50, %c0_51] : memref<8x8x128xf32, #tpu.memory_space<vmem>>, vector<1x8x128xf32>
    %102 = vector.shape_cast %101 : vector<1x8x128xf32> to vector<8x128xf32>
    %103 = arith.truncf %94 : vector<8x128xf32> to vector<8x128xbf16>
    %cst_52 = arith.constant dense<0.000000e+00> : vector<8x128xf32>
    %104 = tpu.matmul %103, %14, %cst_52 {dimension_numbers = #tpu.dot_dimension_numbers<[1], [0], [0], [1], [0, 0, 1, 1], [], []>} : vector<8x128xbf16>, vector<128x128xbf16>, vector<8x128xf32> -> vector<8x128xf32>
    %105 = arith.addf %102, %104 : vector<8x128xf32>
    %106 = math.tanh %105 : vector<8x128xf32>
    %107 = arith.truncf %106 : vector<8x128xf32> to vector<8x128xbf16>
    %108 = arith.index_cast %c7_i32 : i32 to index
    %c0_53 = arith.constant 0 : index
    %c0_54 = arith.constant 0 : index
    %109 = vector.load %arg6[%108, %c0_53, %c0_54] : memref<8x8x128xbf16, #tpu.memory_space<vmem>>, vector<1x8x128xbf16>
    %110 = vector.shape_cast %109 : vector<1x8x128xbf16> to vector<8x128xbf16>
    %111 = vector.shape_cast %107 : vector<8x128xbf16> to vector<1x8x128xbf16>
    tpu.vector_store %arg6[%108, %c0_53, %c0_54], %111 {strides = array<i32>} : memref<8x8x128xbf16, #tpu.memory_space<vmem>>, vector<1x8x128xbf16>,
    %c8_i32 = arith.constant 8 : i32
    %c0_55 = arith.constant 0 : index
    %c0_56 = arith.constant 0 : index
    %112 = vector.load %arg7[%c0_55, %c0_56] : memref<8x128xf32, #tpu.memory_space<vmem>>, vector<8x128xf32>
    tpu.vector_store %arg7[%c0_55, %c0_56], %106 {strides = array<i32>} : memref<8x128xf32, #tpu.memory_space<vmem>>, vector<8x128xf32>,
    return
  }
  func.func @transform_0(%arg0: i32, %arg1: i32) -> (i32, i32, i32) {
    %c0_i32 = arith.constant 0 : i32
    %c0_i32_0 = arith.constant 0 : i32
    return %arg1, %arg0, %c0_i32 : i32, i32, i32
  }
  func.func @transform_1(%arg0: i32, %arg1: i32) -> (i32, i32) {
    %c0_i32 = arith.constant 0 : i32
    %c0_i32_0 = arith.constant 0 : i32
    %c0_i32_1 = arith.constant 0 : i32
    return %c0_i32, %c0_i32_0 : i32, i32
  }
  func.func @transform_2(%arg0: i32, %arg1: i32) -> (i32, i32) {
    %c0_i32 = arith.constant 0 : i32
    %c0_i32_0 = arith.constant 0 : i32
    %c0_i32_1 = arith.constant 0 : i32
    return %c0_i32, %c0_i32_0 : i32, i32
  }
  func.func @transform_3(%arg0: i32, %arg1: i32) -> (i32, i32) {
    %c0_i32 = arith.constant 0 : i32
    %c0_i32_0 = arith.constant 0 : i32
    %c0_i32_1 = arith.constant 0 : i32
    return %c0_i32, %c0_i32_0 : i32, i32
  }
  func.func @transform_4(%arg0: i32, %arg1: i32) -> (i32, i32, i32) {
    %c0_i32 = arith.constant 0 : i32
    %c0_i32_0 = arith.constant 0 : i32
    return %arg1, %arg0, %c0_i32 : i32, i32, i32
  }
}

module attributes {stable_mosaic.version = 11 : i64} {
  func.func @_rnn_fused_kernel(%arg0: i32, %arg1: i32, %arg2: memref<8x8x4xbf16, #tpu.memory_space<vmem>>, %arg3: memref<4x128xbf16, #tpu.memory_space<vmem>>, %arg4: memref<1x128xf32, #tpu.memory_space<vmem>>, %arg5: memref<128x128xbf16, #tpu.memory_space<vmem>>, %arg6: memref<8x8x128xbf16, #tpu.memory_space<vmem>>, %arg7: memref<8x128xf32, #tpu.memory_space<vmem>>, %arg8: memref<8x8x128xf32, #tpu.memory_space<vmem>>) attributes {dimension_semantics = [#tpu.dimension_semantics<parallel>, #tpu.dimension_semantics<arbitrary>], iteration_bounds = array<i64: 1, 1>, scalar_prefetch = 0 : i64, scratch_operands = 2 : i64, tpu.core_type = #tpu.core_type<tc>, window_params = [{transform_indices = @transform_0, window_bounds = array<i64: 8, 8, 4>}, {pipeline_mode = #tpu.pipeline_mode<synchronous>, transform_indices = @transform_1, window_bounds = array<i64: 4, 128>}, {pipeline_mode = #tpu.pipeline_mode<synchronous>, transform_indices = @transform_2, window_bounds = array<i64: 1, 128>}, {pipeline_mode = #tpu.pipeline_mode<synchronous>, transform_indices = @transform_3, window_bounds = array<i64: 128, 128>}, {transform_indices = @transform_4, window_bounds = array<i64: 8, 8, 128>}]} {
    %c0_i32 = arith.constant 0 : i32
    %0 = arith.cmpi eq, %arg1, %c0_i32 : i32
    %1 = arith.extui %0 : i1 to i32
    %c0_i32_0 = arith.constant 0 : i32
    %2 = arith.cmpi ne, %1, %c0_i32_0 : i32
    scf.if %2 {
      %cst_57 = arith.constant 0.000000e+00 : f32
      %113 = vector.broadcast %cst_57 : f32 to vector<8x128xf32>
      %c0_58 = arith.constant 0 : index
      %c0_59 = arith.constant 0 : index
      %114 = vector.load %arg7[%c0_58, %c0_59] : memref<8x128xf32, #tpu.memory_space<vmem>>, vector<8x128xf32>
      tpu.vector_store %arg7[%c0_58, %c0_59], %113 {strides = array<i32>} : memref<8x128xf32, #tpu.memory_space<vmem>>, vector<8x128xf32>,
    } else {
    }
    %c0 = arith.constant 0 : index
    %c0_1 = arith.constant 0 : index
    %c0_2 = arith.constant 0 : index
    %3 = vector.load %arg2[%c0, %c0_1, %c0_2] : memref<8x8x4xbf16, #tpu.memory_space<vmem>>, vector<8x8x4xbf16>
    %4 = vector.shape_cast %3 : vector<8x8x4xbf16> to vector<64x4xbf16>
    %c0_3 = arith.constant 0 : index
    %c0_4 = arith.constant 0 : index
    %5 = vector.load %arg3[%c0_3, %c0_4] : memref<4x128xbf16, #tpu.memory_space<vmem>>, vector<4x128xbf16>
    %cst = arith.constant dense<0.000000e+00> : vector<64x128xf32>
    %6 = tpu.matmul %4, %5, %cst {dimension_numbers = #tpu.dot_dimension_numbers<[1], [0], [0], [1], [0, 0, 1, 1], [], []>} : vector<64x4xbf16>, vector<4x128xbf16>, vector<64x128xf32> -> vector<64x128xf32>
    %7 = vector.shape_cast %6 : vector<64x128xf32> to vector<8x8x128xf32>
    %c0_5 = arith.constant 0 : index
    %c0_6 = arith.constant 0 : index
    %8 = vector.load %arg4[%c0_5, %c0_6] : memref<1x128xf32, #tpu.memory_space<vmem>>, vector<1x128xf32>
    %9 = vector.shape_cast %8 : vector<1x128xf32> to vector<128xf32>
    %10 = vector.shape_cast %9 : vector<128xf32> to vector<1x1x128xf32>
    %11 = vector.broadcast %10 : vector<1x1x128xf32> to vector<8x8x128xf32>
    %12 = arith.addf %7, %11 : vector<8x8x128xf32>
    %c0_7 = arith.constant 0 : index
    %c0_8 = arith.constant 0 : index
    %c0_9 = arith.constant 0 : index
    %13 = vector.load %arg8[%c0_7, %c0_8, %c0_9] : memref<8x8x128xf32, #tpu.memory_space<vmem>>, vector<8x8x128xf32>
    tpu.vector_store %arg8[%c0_7, %c0_8, %c0_9], %12 {strides = array<i32>} : memref<8x8x128xf32, #tpu.memory_space<vmem>>, vector<8x8x128xf32>,
    %c0_10 = arith.constant 0 : index
    %c0_11 = arith.constant 0 : index
    %14 = vector.load %arg5[%c0_10, %c0_11] : memref<128x128xbf16, #tpu.memory_space<vmem>>, vector<128x128xbf16>
    %c0_12 = arith.constant 0 : index
    %c0_13 = arith.constant 0 : index
    %15 = vector.load %arg7[%c0_12, %c0_13] : memref<8x128xf32, #tpu.memory_space<vmem>>, vector<8x128xf32>
    %c0_i32_14 = arith.constant 0 : i32
    %16 = arith.index_cast %c0_i32_14 : i32 to index
    %c0_15 = arith.constant 0 : index
    %c0_16 = arith.constant 0 : index
    %17 = vector.load %arg8[%16, %c0_15, %c0_16] : memref<8x8x128xf32, #tpu.memory_space<vmem>>, vector<1x8x128xf32>
    %18 = vector.shape_cast %17 : vector<1x8x128xf32> to vector<8x128xf32>
    %19 = arith.truncf %15 : vector<8x128xf32> to vector<8x128xbf16>
    %cst_17 = arith.constant dense<0.000000e+00> : vector<8x128xf32>
    %20 = tpu.matmul %19, %14, %cst_17 {dimension_numbers = #tpu.dot_dimension_numbers<[1], [0], [0], [1], [0, 0, 1, 1], [], []>} : vector<8x128xbf16>, vector<128x128xbf16>, vector<8x128xf32> -> vector<8x128xf32>
    %21 = arith.addf %18, %20 : vector<8x128xf32>
    %22 = math.tanh %21 : vector<8x128xf32>
    %23 = arith.truncf %22 : vector<8x128xf32> to vector<8x128xbf16>
    %24 = arith.index_cast %c0_i32_14 : i32 to index
    %c0_18 = arith.constant 0 : index
    %c0_19 = arith.constant 0 : index
    %25 = vector.load %arg6[%24, %c0_18, %c0_19] : memref<8x8x128xbf16, #tpu.memory_space<vmem>>, vector<1x8x128xbf16>
    %26 = vector.shape_cast %25 : vector<1x8x128xbf16> to vector<8x128xbf16>
    %27 = vector.shape_cast %23 : vector<8x128xbf16> to vector<1x8x128xbf16>
    tpu.vector_store %arg6[%24, %c0_18, %c0_19], %27 {strides = array<i32>} : memref<8x8x128xbf16, #tpu.memory_space<vmem>>, vector<1x8x128xbf16>,
    %c1_i32 = arith.constant 1 : i32
    %28 = arith.index_cast %c1_i32 : i32 to index
    %c0_20 = arith.constant 0 : index
    %c0_21 = arith.constant 0 : index
    %29 = vector.load %arg8[%28, %c0_20, %c0_21] : memref<8x8x128xf32, #tpu.memory_space<vmem>>, vector<1x8x128xf32>
    %30 = vector.shape_cast %29 : vector<1x8x128xf32> to vector<8x128xf32>
    %31 = arith.truncf %22 : vector<8x128xf32> to vector<8x128xbf16>
    %cst_22 = arith.constant dense<0.000000e+00> : vector<8x128xf32>
    %32 = tpu.matmul %31, %14, %cst_22 {dimension_numbers = #tpu.dot_dimension_numbers<[1], [0], [0], [1], [0, 0, 1, 1], [], []>} : vector<8x128xbf16>, vector<128x128xbf16>, vector<8x128xf32> -> vector<8x128xf32>
    %33 = arith.addf %30, %32 : vector<8x128xf32>
    %34 = math.tanh %33 : vector<8x128xf32>
    %35 = arith.truncf %34 : vector<8x128xf32> to vector<8x128xbf16>
    %36 = arith.index_cast %c1_i32 : i32 to index
    %c0_23 = arith.constant 0 : index
    %c0_24 = arith.constant 0 : index
    %37 = vector.load %arg6[%36, %c0_23, %c0_24] : memref<8x8x128xbf16, #tpu.memory_space<vmem>>, vector<1x8x128xbf16>
    %38 = vector.shape_cast %37 : vector<1x8x128xbf16> to vector<8x128xbf16>
    %39 = vector.shape_cast %35 : vector<8x128xbf16> to vector<1x8x128xbf16>
    tpu.vector_store %arg6[%36, %c0_23, %c0_24], %39 {strides = array<i32>} : memref<8x8x128xbf16, #tpu.memory_space<vmem>>, vector<1x8x128xbf16>,
    %c2_i32 = arith.constant 2 : i32
    %40 = arith.index_cast %c2_i32 : i32 to index
    %c0_25 = arith.constant 0 : index
    %c0_26 = arith.constant 0 : index
    %41 = vector.load %arg8[%40, %c0_25, %c0_26] : memref<8x8x128xf32, #tpu.memory_space<vmem>>, vector<1x8x128xf32>
    %42 = vector.shape_cast %41 : vector<1x8x128xf32> to vector<8x128xf32>
    %43 = arith.truncf %34 : vector<8x128xf32> to vector<8x128xbf16>
    %cst_27 = arith.constant dense<0.000000e+00> : vector<8x128xf32>
    %44 = tpu.matmul %43, %14, %cst_27 {dimension_numbers = #tpu.dot_dimension_numbers<[1], [0], [0], [1], [0, 0, 1, 1], [], []>} : vector<8x128xbf16>, vector<128x128xbf16>, vector<8x128xf32> -> vector<8x128xf32>
    %45 = arith.addf %42, %44 : vector<8x128xf32>
    %46 = math.tanh %45 : vector<8x128xf32>
    %47 = arith.truncf %46 : vector<8x128xf32> to vector<8x128xbf16>
    %48 = arith.index_cast %c2_i32 : i32 to index
    %c0_28 = arith.constant 0 : index
    %c0_29 = arith.constant 0 : index
    %49 = vector.load %arg6[%48, %c0_28, %c0_29] : memref<8x8x128xbf16, #tpu.memory_space<vmem>>, vector<1x8x128xbf16>
    %50 = vector.shape_cast %49 : vector<1x8x128xbf16> to vector<8x128xbf16>
    %51 = vector.shape_cast %47 : vector<8x128xbf16> to vector<1x8x128xbf16>
    tpu.vector_store %arg6[%48, %c0_28, %c0_29], %51 {strides = array<i32>} : memref<8x8x128xbf16, #tpu.memory_space<vmem>>, vector<1x8x128xbf16>,
    %c3_i32 = arith.constant 3 : i32
    %52 = arith.index_cast %c3_i32 : i32 to index
    %c0_30 = arith.constant 0 : index
    %c0_31 = arith.constant 0 : index
    %53 = vector.load %arg8[%52, %c0_30, %c0_31] : memref<8x8x128xf32, #tpu.memory_space<vmem>>, vector<1x8x128xf32>
    %54 = vector.shape_cast %53 : vector<1x8x128xf32> to vector<8x128xf32>
    %55 = arith.truncf %46 : vector<8x128xf32> to vector<8x128xbf16>
    %cst_32 = arith.constant dense<0.000000e+00> : vector<8x128xf32>
    %56 = tpu.matmul %55, %14, %cst_32 {dimension_numbers = #tpu.dot_dimension_numbers<[1], [0], [0], [1], [0, 0, 1, 1], [], []>} : vector<8x128xbf16>, vector<128x128xbf16>, vector<8x128xf32> -> vector<8x128xf32>
    %57 = arith.addf %54, %56 : vector<8x128xf32>
    %58 = math.tanh %57 : vector<8x128xf32>
    %59 = arith.truncf %58 : vector<8x128xf32> to vector<8x128xbf16>
    %60 = arith.index_cast %c3_i32 : i32 to index
    %c0_33 = arith.constant 0 : index
    %c0_34 = arith.constant 0 : index
    %61 = vector.load %arg6[%60, %c0_33, %c0_34] : memref<8x8x128xbf16, #tpu.memory_space<vmem>>, vector<1x8x128xbf16>
    %62 = vector.shape_cast %61 : vector<1x8x128xbf16> to vector<8x128xbf16>
    %63 = vector.shape_cast %59 : vector<8x128xbf16> to vector<1x8x128xbf16>
    tpu.vector_store %arg6[%60, %c0_33, %c0_34], %63 {strides = array<i32>} : memref<8x8x128xbf16, #tpu.memory_space<vmem>>, vector<1x8x128xbf16>,
    %c4_i32 = arith.constant 4 : i32
    %64 = arith.index_cast %c4_i32 : i32 to index
    %c0_35 = arith.constant 0 : index
    %c0_36 = arith.constant 0 : index
    %65 = vector.load %arg8[%64, %c0_35, %c0_36] : memref<8x8x128xf32, #tpu.memory_space<vmem>>, vector<1x8x128xf32>
    %66 = vector.shape_cast %65 : vector<1x8x128xf32> to vector<8x128xf32>
    %67 = arith.truncf %58 : vector<8x128xf32> to vector<8x128xbf16>
    %cst_37 = arith.constant dense<0.000000e+00> : vector<8x128xf32>
    %68 = tpu.matmul %67, %14, %cst_37 {dimension_numbers = #tpu.dot_dimension_numbers<[1], [0], [0], [1], [0, 0, 1, 1], [], []>} : vector<8x128xbf16>, vector<128x128xbf16>, vector<8x128xf32> -> vector<8x128xf32>
    %69 = arith.addf %66, %68 : vector<8x128xf32>
    %70 = math.tanh %69 : vector<8x128xf32>
    %71 = arith.truncf %70 : vector<8x128xf32> to vector<8x128xbf16>
    %72 = arith.index_cast %c4_i32 : i32 to index
    %c0_38 = arith.constant 0 : index
    %c0_39 = arith.constant 0 : index
    %73 = vector.load %arg6[%72, %c0_38, %c0_39] : memref<8x8x128xbf16, #tpu.memory_space<vmem>>, vector<1x8x128xbf16>
    %74 = vector.shape_cast %73 : vector<1x8x128xbf16> to vector<8x128xbf16>
    %75 = vector.shape_cast %71 : vector<8x128xbf16> to vector<1x8x128xbf16>
    tpu.vector_store %arg6[%72, %c0_38, %c0_39], %75 {strides = array<i32>} : memref<8x8x128xbf16, #tpu.memory_space<vmem>>, vector<1x8x128xbf16>,
    %c5_i32 = arith.constant 5 : i32
    %76 = arith.index_cast %c5_i32 : i32 to index
    %c0_40 = arith.constant 0 : index
    %c0_41 = arith.constant 0 : index
    %77 = vector.load %arg8[%76, %c0_40, %c0_41] : memref<8x8x128xf32, #tpu.memory_space<vmem>>, vector<1x8x128xf32>
    %78 = vector.shape_cast %77 : vector<1x8x128xf32> to vector<8x128xf32>
    %79 = arith.truncf %70 : vector<8x128xf32> to vector<8x128xbf16>
    %cst_42 = arith.constant dense<0.000000e+00> : vector<8x128xf32>
    %80 = tpu.matmul %79, %14, %cst_42 {dimension_numbers = #tpu.dot_dimension_numbers<[1], [0], [0], [1], [0, 0, 1, 1], [], []>} : vector<8x128xbf16>, vector<128x128xbf16>, vector<8x128xf32> -> vector<8x128xf32>
    %81 = arith.addf %78, %80 : vector<8x128xf32>
    %82 = math.tanh %81 : vector<8x128xf32>
    %83 = arith.truncf %82 : vector<8x128xf32> to vector<8x128xbf16>
    %84 = arith.index_cast %c5_i32 : i32 to index
    %c0_43 = arith.constant 0 : index
    %c0_44 = arith.constant 0 : index
    %85 = vector.load %arg6[%84, %c0_43, %c0_44] : memref<8x8x128xbf16, #tpu.memory_space<vmem>>, vector<1x8x128xbf16>
    %86 = vector.shape_cast %85 : vector<1x8x128xbf16> to vector<8x128xbf16>
    %87 = vector.shape_cast %83 : vector<8x128xbf16> to vector<1x8x128xbf16>
    tpu.vector_store %arg6[%84, %c0_43, %c0_44], %87 {strides = array<i32>} : memref<8x8x128xbf16, #tpu.memory_space<vmem>>, vector<1x8x128xbf16>,
    %c6_i32 = arith.constant 6 : i32
    %88 = arith.index_cast %c6_i32 : i32 to index
    %c0_45 = arith.constant 0 : index
    %c0_46 = arith.constant 0 : index
    %89 = vector.load %arg8[%88, %c0_45, %c0_46] : memref<8x8x128xf32, #tpu.memory_space<vmem>>, vector<1x8x128xf32>
    %90 = vector.shape_cast %89 : vector<1x8x128xf32> to vector<8x128xf32>
    %91 = arith.truncf %82 : vector<8x128xf32> to vector<8x128xbf16>
    %cst_47 = arith.constant dense<0.000000e+00> : vector<8x128xf32>
    %92 = tpu.matmul %91, %14, %cst_47 {dimension_numbers = #tpu.dot_dimension_numbers<[1], [0], [0], [1], [0, 0, 1, 1], [], []>} : vector<8x128xbf16>, vector<128x128xbf16>, vector<8x128xf32> -> vector<8x128xf32>
    %93 = arith.addf %90, %92 : vector<8x128xf32>
    %94 = math.tanh %93 : vector<8x128xf32>
    %95 = arith.truncf %94 : vector<8x128xf32> to vector<8x128xbf16>
    %96 = arith.index_cast %c6_i32 : i32 to index
    %c0_48 = arith.constant 0 : index
    %c0_49 = arith.constant 0 : index
    %97 = vector.load %arg6[%96, %c0_48, %c0_49] : memref<8x8x128xbf16, #tpu.memory_space<vmem>>, vector<1x8x128xbf16>
    %98 = vector.shape_cast %97 : vector<1x8x128xbf16> to vector<8x128xbf16>
    %99 = vector.shape_cast %95 : vector<8x128xbf16> to vector<1x8x128xbf16>
    tpu.vector_store %arg6[%96, %c0_48, %c0_49], %99 {strides = array<i32>} : memref<8x8x128xbf16, #tpu.memory_space<vmem>>, vector<1x8x128xbf16>,
    %c7_i32 = arith.constant 7 : i32
    %100 = arith.index_cast %c7_i32 : i32 to index
    %c0_50 = arith.constant 0 : index
    %c0_51 = arith.constant 0 : index
    %101 = vector.load %arg8[%100, %c0_50, %c0_51] : memref<8x8x128xf32, #tpu.memory_space<vmem>>, vector<1x8x128xf32>
    %102 = vector.shape_cast %101 : vector<1x8x128xf32> to vector<8x128xf32>
    %103 = arith.truncf %94 : vector<8x128xf32> to vector<8x128xbf16>
    %cst_52 = arith.constant dense<0.000000e+00> : vector<8x128xf32>
    %104 = tpu.matmul %103, %14, %cst_52 {dimension_numbers = #tpu.dot_dimension_numbers<[1], [0], [0], [1], [0, 0, 1, 1], [], []>} : vector<8x128xbf16>, vector<128x128xbf16>, vector<8x128xf32> -> vector<8x128xf32>
    %105 = arith.addf %102, %104 : vector<8x128xf32>
    %106 = math.tanh %105 : vector<8x128xf32>
    %107 = arith.truncf %106 : vector<8x128xf32> to vector<8x128xbf16>
    %108 = arith.index_cast %c7_i32 : i32 to index
    %c0_53 = arith.constant 0 : index
    %c0_54 = arith.constant 0 : index
    %109 = vector.load %arg6[%108, %c0_53, %c0_54] : memref<8x8x128xbf16, #tpu.memory_space<vmem>>, vector<1x8x128xbf16>
    %110 = vector.shape_cast %109 : vector<1x8x128xbf16> to vector<8x128xbf16>
    %111 = vector.shape_cast %107 : vector<8x128xbf16> to vector<1x8x128xbf16>
    tpu.vector_store %arg6[%108, %c0_53, %c0_54], %111 {strides = array<i32>} : memref<8x8x128xbf16, #tpu.memory_space<vmem>>, vector<1x8x128xbf16>,
    %c8_i32 = arith.constant 8 : i32
    %c0_55 = arith.constant 0 : index
    %c0_56 = arith.constant 0 : index
    %112 = vector.load %arg7[%c0_55, %c0_56] : memref<8x128xf32, #tpu.memory_space<vmem>>, vector<8x128xf32>
    tpu.vector_store %arg7[%c0_55, %c0_56], %106 {strides = array<i32>} : memref<8x128xf32, #tpu.memory_space<vmem>>, vector<8x128xf32>,
    return
  }
  func.func @transform_0(%arg0: i32, %arg1: i32) -> (i32, i32, i32) {
    %c0_i32 = arith.constant 0 : i32
    %c0_i32_0 = arith.constant 0 : i32
    return %arg1, %arg0, %c0_i32 : i32, i32, i32
  }
  func.func @transform_1(%arg0: i32, %arg1: i32) -> (i32, i32) {
    %c0_i32 = arith.constant 0 : i32
    %c0_i32_0 = arith.constant 0 : i32
    %c0_i32_1 = arith.constant 0 : i32
    return %c0_i32, %c0_i32_0 : i32, i32
  }
  func.func @transform_2(%arg0: i32, %arg1: i32) -> (i32, i32) {
    %c0_i32 = arith.constant 0 : i32
    %c0_i32_0 = arith.constant 0 : i32
    %c0_i32_1 = arith.constant 0 : i32
    return %c0_i32, %c0_i32_0 : i32, i32
  }
  func.func @transform_3(%arg0: i32, %arg1: i32) -> (i32, i32) {
    %c0_i32 = arith.constant 0 : i32
    %c0_i32_0 = arith.constant 0 : i32
    %c0_i32_1 = arith.constant 0 : i32
    return %c0_i32, %c0_i32_0 : i32, i32
  }
  func.func @transform_4(%arg0: i32, %arg1: i32) -> (i32, i32, i32) {
    %c0_i32 = arith.constant 0 : i32
    %c0_i32_0 = arith.constant 0 : i32
    return %arg1, %arg0, %c0_i32 : i32, i32, i32
  }
}

</mosaic_0001>

<llo_original>
// kernel: rnn_freq_and_time_forward.11
$region0: #{rnn_freq_and_time_forward.11}
  #allocation0 [shape = 'u32[]', space=smem, size = 0x4, offset = 0x4, fixed_abs, tag = 'smem constant byte address 0x4 - core index']
  #allocation1 [shape = 'u32[144,128]{1,0:T(1,128)}', space=vmem, size = 0x12000, scoped, tag = 'internal scratch']
  #allocation2 [shape = 'f32[8,128]{1,0:T(8,128)}', space=vmem, size = 0x1000, scoped, tag = 'scratch operand']
  #allocation3 [shape = 'f32[8,8,128]{2,1,0:T(8,128)}', space=vmem, size = 0x8000, scoped, tag = 'scratch operand']
  %s0 = inlined_call_operand.vmem [shape: bf16[8,8,4], index: 0, kind: input, shape index: {}]
  %s1 = inlined_call_operand.vmem [shape: bf16[4,128], index: 1, kind: input, shape index: {}]
  %s2 = inlined_call_operand.vmem [shape: f32[1,128], index: 2, kind: input, shape index: {}]
  %s3 = inlined_call_operand.vmem [shape: bf16[128,128], index: 3, kind: input, shape index: {}]
  %s4 = inlined_call_operand.vmem [shape: bf16[8,8,128], index: 4, kind: output, shape index: {}]
  %s5 = sld [smem:[#allocation0]]
  $region30: #{rnn_freq_and_time_forward.11} parent=0
    _
  %s7 = ssub.s32 1, %s5
  %s8 = scalar_select 0, %s7, %s5
  // Predicated region
  $region2: #{rnn_freq_and_time_forward.11} parent=0 // pred_check
    _
  $region3: #{rnn_freq_and_time_forward.11} parent=0 // pred_check_branch
    %10 = sbr.rel (0) target = $region5
  $region4: #{rnn_freq_and_time_forward.11} parent=0 // pred_region
    _
  $region5: #{rnn_freq_and_time_forward.11} parent=0 // pred_fallthru
    _
  // Predicated region
  $region6: #{rnn_freq_and_time_forward.11} parent=0 // pred_check
    _
  $region7: #{rnn_freq_and_time_forward.11} parent=0 // pred_check_branch
    %12 = sbr.rel (0) target = $region9
  $region8: #{rnn_freq_and_time_forward.11} parent=0 // pred_region
    _
  $region9: #{rnn_freq_and_time_forward.11} parent=0 // pred_fallthru
    _
  // Predicated region
  $region10: #{rnn_freq_and_time_forward.11} parent=0 // pred_check
    _
  $region11: #{rnn_freq_and_time_forward.11} parent=0 // pred_check_branch
    %14 = sbr.rel (0) target = $region13
  $region12: #{rnn_freq_and_time_forward.11} parent=0 // pred_region
    _
  $region13: #{rnn_freq_and_time_forward.11} parent=0 // pred_fallthru
    _
  // Predicated region
  $region14: #{rnn_freq_and_time_forward.11} parent=0 // pred_check
    _
  $region15: #{rnn_freq_and_time_forward.11} parent=0 // pred_check_branch
    %16 = sbr.rel (0) target = $region17
  $region16: #{rnn_freq_and_time_forward.11} parent=0 // pred_region
    _
  $region17: #{rnn_freq_and_time_forward.11} parent=0 // pred_fallthru
    _
  %p18 = scmp.eq.s32.totalorder 0, 0
  // Predicated region
  $region18: #{rnn_freq_and_time_forward.11} parent=0 // pred_check
    %p19 = pneg %p18
  $region19: #{rnn_freq_and_time_forward.11} parent=0 // pred_check_branch
    %21 = sbr.rel (%p19) target = $region21
  $region20: #{rnn_freq_and_time_forward.11} parent=0 // pred_region
    %22 = vst [vmem:[#allocation2] sm:$0xff] 0.0
  $region21: #{rnn_freq_and_time_forward.11} parent=0 // pred_fallthru
    _
  %v23 = vld [vmem:[%s0] sm:$0xf]
  %v24 = vld [vmem:[%s0 + $0x4] sm:$0xf]
  %v25 = vld [vmem:[%s0 + $0x8] sm:$0xf]
  %v26 = vld [vmem:[%s0 + $0xc] sm:$0xf]
  %v27 = vld [vmem:[%s0 + $0x10] sm:$0xf]
  %v28 = vld [vmem:[%s0 + $0x14] sm:$0xf]
  %v29 = vld [vmem:[%s0 + $0x18] sm:$0xf]
  %v30 = vld [vmem:[%s0 + $0x1c] sm:$0xf]
  %v31 = vld [vmem:[%s1] sm:$0x3]
  %v40 = vunpack.c.l.b16 %v23
  %v41 = vunpack.c.l.b16 %v24
  %v42 = vunpack.c.l.b16 %v25
  %v43 = vunpack.c.l.b16 %v26
  %v44 = vunpack.c.l.b16 %v27
  %v45 = vunpack.c.l.b16 %v28
  %v46 = vunpack.c.l.b16 %v29
  %v47 = vunpack.c.l.b16 %v30
  %v48 = vpack.c.b16 %v41, %v40
  %v49 = vpack.c.b16 %v43, %v42
  %v50 = vpack.c.b16 %v45, %v44
  %v51 = vpack.c.b16 %v47, %v46
  %vm52 = vcmask 31744
  %v54 = vsel %vm52, %v48, 0
  %v57 = vsel %vm52, %v49, 0
  %v60 = vsel %vm52, %v50, 0
  %v63 = vsel %vm52, %v51, 0
  %vm65 = vcmask 1041408
  %v67 = vsel %vm65, %v31, 0
  %69 = vmatprep.subr.bf16.mxu0 0
  %70 = vmatpush1.bf16.msra.mxu0 0
  %71 = vmatprep.subr.bf16.mxu0 0
  %72 = vmatpush1.bf16.msra.mxu0 0
  %73 = vmatprep.subr.bf16.mxu0 0
  %74 = vmatpush1.bf16.msra.mxu0 0
  %75 = vmatprep.subr.bf16.mxu0 0
  %76 = vmatpush1.bf16.msra.mxu0 0
  %77 = vmatprep.subr.bf16.mxu0 0
  %78 = vmatpush1.bf16.msra.mxu0 0
  %79 = vmatprep.subr.bf16.mxu0 0
  %80 = vmatpush1.bf16.msra.mxu0 0
  %81 = vmatprep.subr.bf16.mxu0 0
  %82 = vmatpush1.bf16.msra.mxu0 0
  %83 = vmatprep.subr.bf16.mxu0 0
  %84 = vmatpush1.bf16.msra.mxu0 %v67
  %85 = vmatprep.subr.bf16.mxu0 0
  %86 = vmatpush2.bf16.msra.mxu0 0
  %87 = vmatprep.subr.bf16.mxu0 0
  %88 = vmatpush2.bf16.msra.mxu0 0
  %89 = vmatprep.subr.bf16.mxu0 0
  %90 = vmatpush2.bf16.msra.mxu0 0
  %91 = vmatprep.subr.bf16.mxu0 0
  %92 = vmatpush2.bf16.msra.mxu0 0
  %93 = vmatprep.subr.bf16.mxu0 0
  %94 = vmatpush2.bf16.msra.mxu0 0
  %95 = vmatprep.subr.bf16.mxu0 0
  %96 = vmatpush2.bf16.msra.mxu0 0
  %97 = vmatprep.subr.bf16.mxu0 0
  %98 = vmatpush2.bf16.msra.mxu0 0
  %99 = vmatprep.subr.bf16.mxu0 0
  %100 = vmatpush2.bf16.msra.mxu0 0
  %101 = vmatprep.mubr.bf16.mxu0 0
  %102 = vmatmul.mubr.bf16.gmra.mxu0 %v54
  %v103 = vpop.f32.mrf.mxu0
  %v104 = vadd.f32 0.0, %v103
  %v105 = vpop.f32.mrf.mxu0
  %v106 = vpop.f32.mrf.mxu0
  %v107 = vadd.f32 0.0, %v106
  %v108 = vpop.f32.mrf.mxu0
  %109 = vmatprep.mubr.bf16.mxu0 0
  %110 = vmatmul.mubr.bf16.gmra.mxu0 %v57
  %v111 = vpop.f32.mrf.mxu0
  %v112 = vadd.f32 0.0, %v111
  %v113 = vpop.f32.mrf.mxu0
  %v114 = vpop.f32.mrf.mxu0
  %v115 = vadd.f32 0.0, %v114
  %v116 = vpop.f32.mrf.mxu0
  %117 = vmatprep.mubr.bf16.mxu0 0
  %118 = vmatmul.mubr.bf16.gmra.mxu0 %v60
  %v119 = vpop.f32.mrf.mxu0
  %v120 = vadd.f32 0.0, %v119
  %v121 = vpop.f32.mrf.mxu0
  %v122 = vpop.f32.mrf.mxu0
  %v123 = vadd.f32 0.0, %v122
  %v124 = vpop.f32.mrf.mxu0
  %125 = vmatprep.mubr.bf16.mxu0 0
  %126 = vmatmul.mubr.bf16.gmra.mxu0 %v63
  %v127 = vpop.f32.mrf.mxu0
  %v128 = vadd.f32 0.0, %v127
  %v129 = vpop.f32.mrf.mxu0
  %v130 = vpop.f32.mrf.mxu0
  %v131 = vadd.f32 0.0, %v130
  %v132 = vpop.f32.mrf.mxu0
  %133 = vdwg.mxu0
  %v134 = vld [vmem:[%s2] sm:$0x1]
  %v136 = vlaneseq
  %v137 = vshrl.u32 %v136, 7
  %v138 = vsub.s32 0, %v137
  %v139 = vrot.slane %v134, %v138
  %v141 = vadd.f32 %v104, %v139
  %v142 = vadd.f32 %v107, %v139
  %v143 = vadd.f32 %v112, %v139
  %v144 = vadd.f32 %v115, %v139
  %v145 = vadd.f32 %v120, %v139
  %v146 = vadd.f32 %v123, %v139
  %v147 = vadd.f32 %v128, %v139
  %v148 = vadd.f32 %v131, %v139
  %149 = vst [vmem:[#allocation3] sm:$0xff] %v141
  %150 = vst [vmem:[#allocation3 + $0x8] sm:$0xff] %v142
  %151 = vst [vmem:[#allocation3 + $0x10] sm:$0xff] %v143
  %152 = vst [vmem:[#allocation3 + $0x18] sm:$0xff] %v144
  %153 = vst [vmem:[#allocation3 + $0x20] sm:$0xff] %v145
  %154 = vst [vmem:[#allocation3 + $0x28] sm:$0xff] %v146
  %155 = vst [vmem:[#allocation3 + $0x30] sm:$0xff] %v147
  %156 = vst [vmem:[#allocation3 + $0x38] sm:$0xff] %v148
  %v157 = vld [vmem:[%s3] sm:$0xf]
  %v158 = vld [vmem:[%s3 + $0x4] sm:$0xf]
  %v159 = vld [vmem:[%s3 + $0x8] sm:$0xf]
  %v160 = vld [vmem:[%s3 + $0xc] sm:$0xf]
  %v161 = vld [vmem:[%s3 + $0x10] sm:$0xf]
  %v162 = vld [vmem:[%s3 + $0x14] sm:$0xf]
  %v163 = vld [vmem:[%s3 + $0x18] sm:$0xf]
  %v164 = vld [vmem:[%s3 + $0x1c] sm:$0xf]
  %v165 = vld [vmem:[%s3 + $0x20] sm:$0xf]
  %v166 = vld [vmem:[%s3 + $0x24] sm:$0xf]
  %v167 = vld [vmem:[%s3 + $0x28] sm:$0xf]
  %v168 = vld [vmem:[%s3 + $0x2c] sm:$0xf]
  %v169 = vld [vmem:[%s3 + $0x30] sm:$0xf]
  %v170 = vld [vmem:[%s3 + $0x34] sm:$0xf]
  %v171 = vld [vmem:[%s3 + $0x38] sm:$0xf]
  %v172 = vld [vmem:[%s3 + $0x3c] sm:$0xf]
  %v173 = vld [vmem:[#allocation2] sm:$0xff]
  %v174 = vld [vmem:[#allocation3] sm:$0xff]
  %v175 = vpack.c.bf16 %v173, %v173
  %v192 = vunpack.c.l.b16 %v157
  %v193 = vunpack.c.l.b16 %v158
  %v194 = vunpack.c.l.b16 %v159
  %v195 = vunpack.c.l.b16 %v160
  %v196 = vunpack.c.l.b16 %v161
  %v197 = vunpack.c.l.b16 %v162
  %v198 = vunpack.c.l.b16 %v163
  %v199 = vunpack.c.l.b16 %v164
  %v200 = vunpack.c.l.b16 %v165
  %v201 = vunpack.c.l.b16 %v166
  %v202 = vunpack.c.l.b16 %v167
  %v203 = vunpack.c.l.b16 %v168
  %v204 = vunpack.c.l.b16 %v169
  %v205 = vunpack.c.l.b16 %v170
  %v206 = vunpack.c.l.b16 %v171
  %v207 = vunpack.c.l.b16 %v172
  %v208 = vpack.c.b16 %v193, %v192
  %v209 = vpack.c.b16 %v195, %v194
  %v210 = vpack.c.b16 %v197, %v196
  %v211 = vpack.c.b16 %v199, %v198
  %v212 = vpack.c.b16 %v201, %v200
  %v213 = vpack.c.b16 %v203, %v202
  %v214 = vpack.c.b16 %v205, %v204
  %v215 = vpack.c.b16 %v207, %v206
  %224 = vmatprep.subr.bf16.mxu0 0
  %225 = vmatpush1.bf16.msra.mxu0 %v215
  %226 = vmatprep.subr.bf16.mxu0 0
  %227 = vmatpush1.bf16.msra.mxu0 %v214
  %228 = vmatprep.subr.bf16.mxu0 0
  %229 = vmatpush1.bf16.msra.mxu0 %v213
  %230 = vmatprep.subr.bf16.mxu0 0
  %231 = vmatpush1.bf16.msra.mxu0 %v212
  %232 = vmatprep.subr.bf16.mxu0 0
  %233 = vmatpush1.bf16.msra.mxu0 %v211
  %234 = vmatprep.subr.bf16.mxu0 0
  %235 = vmatpush1.bf16.msra.mxu0 %v210
  %236 = vmatprep.subr.bf16.mxu0 0
  %237 = vmatpush1.bf16.msra.mxu0 %v209
  %238 = vmatprep.subr.bf16.mxu0 0
  %239 = vmatpush1.bf16.msra.mxu0 %v208
  %240 = vmatprep.subr.bf16.mxu0 0
  %241 = vmatpush2.bf16.msra.mxu0 0
  %242 = vmatprep.subr.bf16.mxu0 0
  %243 = vmatpush2.bf16.msra.mxu0 0
  %244 = vmatprep.subr.bf16.mxu0 0
  %245 = vmatpush2.bf16.msra.mxu0 0
  %246 = vmatprep.subr.bf16.mxu0 0
  %247 = vmatpush2.bf16.msra.mxu0 0
  %248 = vmatprep.subr.bf16.mxu0 0
  %249 = vmatpush2.bf16.msra.mxu0 0
  %250 = vmatprep.subr.bf16.mxu0 0
  %251 = vmatpush2.bf16.msra.mxu0 0
  %252 = vmatprep.subr.bf16.mxu0 0
  %253 = vmatpush2.bf16.msra.mxu0 0
  %254 = vmatprep.subr.bf16.mxu0 0
  %255 = vmatpush2.bf16.msra.mxu0 0
  %256 = vmatprep.mubr.bf16.mxu0 0
  %257 = vmatmul.mubr.bf16.gmra.mxu0 %v175
  %v258 = vpop.f32.mrf.mxu0
  %v259 = vadd.f32 0.0, %v258
  %v260 = vpop.f32.mrf.mxu0
  %v261 = vpop.f32.mrf.mxu0
  %v262 = vpop.f32.mrf.mxu0
  %263 = vdwg.mxu0
  %v264 = vadd.f32 %v174, %v259
  %v265 = vtanh.pop %v264
  %v266 = vpack.c.bf16 %v265, %v265
  %267 = vst [vmem:[%s4] sm:$0xf] %v266
  %s268 = scalar_lea.vmem [#allocation3], 8
  %v269 = vld [vmem:[%s268] sm:$0xff]
  %270 = vmatprep.subr.bf16.mxu0 0
  %271 = vmatpush1.bf16.msra.mxu0 %v215
  %272 = vmatprep.subr.bf16.mxu0 0
  %273 = vmatpush1.bf16.msra.mxu0 %v214
  %274 = vmatprep.subr.bf16.mxu0 0
  %275 = vmatpush1.bf16.msra.mxu0 %v213
  %276 = vmatprep.subr.bf16.mxu0 0
  %277 = vmatpush1.bf16.msra.mxu0 %v212
  %278 = vmatprep.subr.bf16.mxu0 0
  %279 = vmatpush1.bf16.msra.mxu0 %v211
  %280 = vmatprep.subr.bf16.mxu0 0
  %281 = vmatpush1.bf16.msra.mxu0 %v210
  %282 = vmatprep.subr.bf16.mxu0 0
  %283 = vmatpush1.bf16.msra.mxu0 %v209
  %284 = vmatprep.subr.bf16.mxu0 0
  %285 = vmatpush1.bf16.msra.mxu0 %v208
  %286 = vmatprep.subr.bf16.mxu0 0
  %287 = vmatpush2.bf16.msra.mxu0 0
  %288 = vmatprep.subr.bf16.mxu0 0
  %289 = vmatpush2.bf16.msra.mxu0 0
  %290 = vmatprep.subr.bf16.mxu0 0
  %291 = vmatpush2.bf16.msra.mxu0 0
  %292 = vmatprep.subr.bf16.mxu0 0
  %293 = vmatpush2.bf16.msra.mxu0 0
  %294 = vmatprep.subr.bf16.mxu0 0
  %295 = vmatpush2.bf16.msra.mxu0 0
  %296 = vmatprep.subr.bf16.mxu0 0
  %297 = vmatpush2.bf16.msra.mxu0 0
  %298 = vmatprep.subr.bf16.mxu0 0
  %299 = vmatpush2.bf16.msra.mxu0 0
  %300 = vmatprep.subr.bf16.mxu0 0
  %301 = vmatpush2.bf16.msra.mxu0 0
  %302 = vmatprep.mubr.bf16.mxu0 0
  %303 = vmatmul.mubr.bf16.gmra.mxu0 %v266
  %v304 = vpop.f32.mrf.mxu0
  %v305 = vadd.f32 0.0, %v304
  %v306 = vpop.f32.mrf.mxu0
  %v307 = vpop.f32.mrf.mxu0
  %v308 = vpop.f32.mrf.mxu0
  %309 = vdwg.mxu0
  %v310 = vadd.f32 %v269, %v305
  %v311 = vtanh.pop %v310
  %v312 = vpack.c.bf16 %v311, %v311
  %s313 = scalar_lea.vmem %s4, 4
  %314 = vst [vmem:[%s313] sm:$0xf] %v312
  %s315 = scalar_lea.vmem [#allocation3], 16
  %v316 = vld [vmem:[%s315] sm:$0xff]
  %317 = vmatprep.subr.bf16.mxu0 0
  %318 = vmatpush1.bf16.msra.mxu0 %v215
  %319 = vmatprep.subr.bf16.mxu0 0
  %320 = vmatpush1.bf16.msra.mxu0 %v214
  %321 = vmatprep.subr.bf16.mxu0 0
  %322 = vmatpush1.bf16.msra.mxu0 %v213
  %323 = vmatprep.subr.bf16.mxu0 0
  %324 = vmatpush1.bf16.msra.mxu0 %v212
  %325 = vmatprep.subr.bf16.mxu0 0
  %326 = vmatpush1.bf16.msra.mxu0 %v211
  %327 = vmatprep.subr.bf16.mxu0 0
  %328 = vmatpush1.bf16.msra.mxu0 %v210
  %329 = vmatprep.subr.bf16.mxu0 0
  %330 = vmatpush1.bf16.msra.mxu0 %v209
  %331 = vmatprep.subr.bf16.mxu0 0
  %332 = vmatpush1.bf16.msra.mxu0 %v208
  %333 = vmatprep.subr.bf16.mxu0 0
  %334 = vmatpush2.bf16.msra.mxu0 0
  %335 = vmatprep.subr.bf16.mxu0 0
  %336 = vmatpush2.bf16.msra.mxu0 0
  %337 = vmatprep.subr.bf16.mxu0 0
  %338 = vmatpush2.bf16.msra.mxu0 0
  %339 = vmatprep.subr.bf16.mxu0 0
  %340 = vmatpush2.bf16.msra.mxu0 0
  %341 = vmatprep.subr.bf16.mxu0 0
  %342 = vmatpush2.bf16.msra.mxu0 0
  %343 = vmatprep.subr.bf16.mxu0 0
  %344 = vmatpush2.bf16.msra.mxu0 0
  %345 = vmatprep.subr.bf16.mxu0 0
  %346 = vmatpush2.bf16.msra.mxu0 0
  %347 = vmatprep.subr.bf16.mxu0 0
  %348 = vmatpush2.bf16.msra.mxu0 0
  %349 = vmatprep.mubr.bf16.mxu0 0
  %350 = vmatmul.mubr.bf16.gmra.mxu0 %v312
  %v351 = vpop.f32.mrf.mxu0
  %v352 = vadd.f32 0.0, %v351
  %v353 = vpop.f32.mrf.mxu0
  %v354 = vpop.f32.mrf.mxu0
  %v355 = vpop.f32.mrf.mxu0
  %356 = vdwg.mxu0
  %v357 = vadd.f32 %v316, %v352
  %v358 = vtanh.pop %v357
  %v359 = vpack.c.bf16 %v358, %v358
  %s360 = scalar_lea.vmem %s4, 8
  %361 = vst [vmem:[%s360] sm:$0xf] %v359
  %s362 = scalar_lea.vmem [#allocation3], 24
  %v363 = vld [vmem:[%s362] sm:$0xff]
  %364 = vmatprep.subr.bf16.mxu0 0
  %365 = vmatpush1.bf16.msra.mxu0 %v215
  %366 = vmatprep.subr.bf16.mxu0 0
  %367 = vmatpush1.bf16.msra.mxu0 %v214
  %368 = vmatprep.subr.bf16.mxu0 0
  %369 = vmatpush1.bf16.msra.mxu0 %v213
  %370 = vmatprep.subr.bf16.mxu0 0
  %371 = vmatpush1.bf16.msra.mxu0 %v212
  %372 = vmatprep.subr.bf16.mxu0 0
  %373 = vmatpush1.bf16.msra.mxu0 %v211
  %374 = vmatprep.subr.bf16.mxu0 0
  %375 = vmatpush1.bf16.msra.mxu0 %v210
  %376 = vmatprep.subr.bf16.mxu0 0
  %377 = vmatpush1.bf16.msra.mxu0 %v209
  %378 = vmatprep.subr.bf16.mxu0 0
  %379 = vmatpush1.bf16.msra.mxu0 %v208
  %380 = vmatprep.subr.bf16.mxu0 0
  %381 = vmatpush2.bf16.msra.mxu0 0
  %382 = vmatprep.subr.bf16.mxu0 0
  %383 = vmatpush2.bf16.msra.mxu0 0
  %384 = vmatprep.subr.bf16.mxu0 0
  %385 = vmatpush2.bf16.msra.mxu0 0
  %386 = vmatprep.subr.bf16.mxu0 0
  %387 = vmatpush2.bf16.msra.mxu0 0
  %388 = vmatprep.subr.bf16.mxu0 0
  %389 = vmatpush2.bf16.msra.mxu0 0
  %390 = vmatprep.subr.bf16.mxu0 0
  %391 = vmatpush2.bf16.msra.mxu0 0
  %392 = vmatprep.subr.bf16.mxu0 0
  %393 = vmatpush2.bf16.msra.mxu0 0
  %394 = vmatprep.subr.bf16.mxu0 0
  %395 = vmatpush2.bf16.msra.mxu0 0
  %396 = vmatprep.mubr.bf16.mxu0 0
  %397 = vmatmul.mubr.bf16.gmra.mxu0 %v359
  %v398 = vpop.f32.mrf.mxu0
  %v399 = vadd.f32 0.0, %v398
  %v400 = vpop.f32.mrf.mxu0
  %v401 = vpop.f32.mrf.mxu0
  %v402 = vpop.f32.mrf.mxu0
  %403 = vdwg.mxu0
  %v404 = vadd.f32 %v363, %v399
  %v405 = vtanh.pop %v404
  %v406 = vpack.c.bf16 %v405, %v405
  %s407 = scalar_lea.vmem %s4, 12
  %408 = vst [vmem:[%s407] sm:$0xf] %v406
  %s409 = scalar_lea.vmem [#allocation3], 32
  %v410 = vld [vmem:[%s409] sm:$0xff]
  %411 = vmatprep.subr.bf16.mxu0 0
  %412 = vmatpush1.bf16.msra.mxu0 %v215
  %413 = vmatprep.subr.bf16.mxu0 0
  %414 = vmatpush1.bf16.msra.mxu0 %v214
  %415 = vmatprep.subr.bf16.mxu0 0
  %416 = vmatpush1.bf16.msra.mxu0 %v213
  %417 = vmatprep.subr.bf16.mxu0 0
  %418 = vmatpush1.bf16.msra.mxu0 %v212
  %419 = vmatprep.subr.bf16.mxu0 0
  %420 = vmatpush1.bf16.msra.mxu0 %v211
  %421 = vmatprep.subr.bf16.mxu0 0
  %422 = vmatpush1.bf16.msra.mxu0 %v210
  %423 = vmatprep.subr.bf16.mxu0 0
  %424 = vmatpush1.bf16.msra.mxu0 %v209
  %425 = vmatprep.subr.bf16.mxu0 0
  %426 = vmatpush1.bf16.msra.mxu0 %v208
  %427 = vmatprep.subr.bf16.mxu0 0
  %428 = vmatpush2.bf16.msra.mxu0 0
  %429 = vmatprep.subr.bf16.mxu0 0
  %430 = vmatpush2.bf16.msra.mxu0 0
  %431 = vmatprep.subr.bf16.mxu0 0
  %432 = vmatpush2.bf16.msra.mxu0 0
  %433 = vmatprep.subr.bf16.mxu0 0
  %434 = vmatpush2.bf16.msra.mxu0 0
  %435 = vmatprep.subr.bf16.mxu0 0
  %436 = vmatpush2.bf16.msra.mxu0 0
  %437 = vmatprep.subr.bf16.mxu0 0
  %438 = vmatpush2.bf16.msra.mxu0 0
  %439 = vmatprep.subr.bf16.mxu0 0
  %440 = vmatpush2.bf16.msra.mxu0 0
  %441 = vmatprep.subr.bf16.mxu0 0
  %442 = vmatpush2.bf16.msra.mxu0 0
  %443 = vmatprep.mubr.bf16.mxu0 0
  %444 = vmatmul.mubr.bf16.gmra.mxu0 %v406
  %v445 = vpop.f32.mrf.mxu0
  %v446 = vadd.f32 0.0, %v445
  %v447 = vpop.f32.mrf.mxu0
  %v448 = vpop.f32.mrf.mxu0
  %v449 = vpop.f32.mrf.mxu0
  %450 = vdwg.mxu0
  %v451 = vadd.f32 %v410, %v446
  %v452 = vtanh.pop %v451
  %v453 = vpack.c.bf16 %v452, %v452
  %s454 = scalar_lea.vmem %s4, 16
  %455 = vst [vmem:[%s454] sm:$0xf] %v453
  %s456 = scalar_lea.vmem [#allocation3], 40
  %v457 = vld [vmem:[%s456] sm:$0xff]
  %458 = vmatprep.subr.bf16.mxu0 0
  %459 = vmatpush1.bf16.msra.mxu0 %v215
  %460 = vmatprep.subr.bf16.mxu0 0
  %461 = vmatpush1.bf16.msra.mxu0 %v214
  %462 = vmatprep.subr.bf16.mxu0 0
  %463 = vmatpush1.bf16.msra.mxu0 %v213
  %464 = vmatprep.subr.bf16.mxu0 0
  %465 = vmatpush1.bf16.msra.mxu0 %v212
  %466 = vmatprep.subr.bf16.mxu0 0
  %467 = vmatpush1.bf16.msra.mxu0 %v211
  %468 = vmatprep.subr.bf16.mxu0 0
  %469 = vmatpush1.bf16.msra.mxu0 %v210
  %470 = vmatprep.subr.bf16.mxu0 0
  %471 = vmatpush1.bf16.msra.mxu0 %v209
  %472 = vmatprep.subr.bf16.mxu0 0
  %473 = vmatpush1.bf16.msra.mxu0 %v208
  %474 = vmatprep.subr.bf16.mxu0 0
  %475 = vmatpush2.bf16.msra.mxu0 0
  %476 = vmatprep.subr.bf16.mxu0 0
  %477 = vmatpush2.bf16.msra.mxu0 0
  %478 = vmatprep.subr.bf16.mxu0 0
  %479 = vmatpush2.bf16.msra.mxu0 0
  %480 = vmatprep.subr.bf16.mxu0 0
  %481 = vmatpush2.bf16.msra.mxu0 0
  %482 = vmatprep.subr.bf16.mxu0 0
  %483 = vmatpush2.bf16.msra.mxu0 0
  %484 = vmatprep.subr.bf16.mxu0 0
  %485 = vmatpush2.bf16.msra.mxu0 0
  %486 = vmatprep.subr.bf16.mxu0 0
  %487 = vmatpush2.bf16.msra.mxu0 0
  %488 = vmatprep.subr.bf16.mxu0 0
  %489 = vmatpush2.bf16.msra.mxu0 0
  %490 = vmatprep.mubr.bf16.mxu0 0
  %491 = vmatmul.mubr.bf16.gmra.mxu0 %v453
  %v492 = vpop.f32.mrf.mxu0
  %v493 = vadd.f32 0.0, %v492
  %v494 = vpop.f32.mrf.mxu0
  %v495 = vpop.f32.mrf.mxu0
  %v496 = vpop.f32.mrf.mxu0
  %497 = vdwg.mxu0
  %v498 = vadd.f32 %v457, %v493
  %v499 = vtanh.pop %v498
  %v500 = vpack.c.bf16 %v499, %v499
  %s501 = scalar_lea.vmem %s4, 20
  %502 = vst [vmem:[%s501] sm:$0xf] %v500
  %s503 = scalar_lea.vmem [#allocation3], 48
  %v504 = vld [vmem:[%s503] sm:$0xff]
  %505 = vmatprep.subr.bf16.mxu0 0
  %506 = vmatpush1.bf16.msra.mxu0 %v215
  %507 = vmatprep.subr.bf16.mxu0 0
  %508 = vmatpush1.bf16.msra.mxu0 %v214
  %509 = vmatprep.subr.bf16.mxu0 0
  %510 = vmatpush1.bf16.msra.mxu0 %v213
  %511 = vmatprep.subr.bf16.mxu0 0
  %512 = vmatpush1.bf16.msra.mxu0 %v212
  %513 = vmatprep.subr.bf16.mxu0 0
  %514 = vmatpush1.bf16.msra.mxu0 %v211
  %515 = vmatprep.subr.bf16.mxu0 0
  %516 = vmatpush1.bf16.msra.mxu0 %v210
  %517 = vmatprep.subr.bf16.mxu0 0
  %518 = vmatpush1.bf16.msra.mxu0 %v209
  %519 = vmatprep.subr.bf16.mxu0 0
  %520 = vmatpush1.bf16.msra.mxu0 %v208
  %521 = vmatprep.subr.bf16.mxu0 0
  %522 = vmatpush2.bf16.msra.mxu0 0
  %523 = vmatprep.subr.bf16.mxu0 0
  %524 = vmatpush2.bf16.msra.mxu0 0
  %525 = vmatprep.subr.bf16.mxu0 0
  %526 = vmatpush2.bf16.msra.mxu0 0
  %527 = vmatprep.subr.bf16.mxu0 0
  %528 = vmatpush2.bf16.msra.mxu0 0
  %529 = vmatprep.subr.bf16.mxu0 0
  %530 = vmatpush2.bf16.msra.mxu0 0
  %531 = vmatprep.subr.bf16.mxu0 0
  %532 = vmatpush2.bf16.msra.mxu0 0
  %533 = vmatprep.subr.bf16.mxu0 0
  %534 = vmatpush2.bf16.msra.mxu0 0
  %535 = vmatprep.subr.bf16.mxu0 0
  %536 = vmatpush2.bf16.msra.mxu0 0
  %537 = vmatprep.mubr.bf16.mxu0 0
  %538 = vmatmul.mubr.bf16.gmra.mxu0 %v500
  %v539 = vpop.f32.mrf.mxu0
  %v540 = vadd.f32 0.0, %v539
  %v541 = vpop.f32.mrf.mxu0
  %v542 = vpop.f32.mrf.mxu0
  %v543 = vpop.f32.mrf.mxu0
  %544 = vdwg.mxu0
  %v545 = vadd.f32 %v504, %v540
  %v546 = vtanh.pop %v545
  %v547 = vpack.c.bf16 %v546, %v546
  %s548 = scalar_lea.vmem %s4, 24
  %549 = vst [vmem:[%s548] sm:$0xf] %v547
  %s550 = scalar_lea.vmem [#allocation3], 56
  %v551 = vld [vmem:[%s550] sm:$0xff]
  %552 = vmatprep.subr.bf16.mxu0 0
  %553 = vmatpush1.bf16.msra.mxu0 %v215
  %554 = vmatprep.subr.bf16.mxu0 0
  %555 = vmatpush1.bf16.msra.mxu0 %v214
  %556 = vmatprep.subr.bf16.mxu0 0
  %557 = vmatpush1.bf16.msra.mxu0 %v213
  %558 = vmatprep.subr.bf16.mxu0 0
  %559 = vmatpush1.bf16.msra.mxu0 %v212
  %560 = vmatprep.subr.bf16.mxu0 0
  %561 = vmatpush1.bf16.msra.mxu0 %v211
  %562 = vmatprep.subr.bf16.mxu0 0
  %563 = vmatpush1.bf16.msra.mxu0 %v210
  %564 = vmatprep.subr.bf16.mxu0 0
  %565 = vmatpush1.bf16.msra.mxu0 %v209
  %566 = vmatprep.subr.bf16.mxu0 0
  %567 = vmatpush1.bf16.msra.mxu0 %v208
  %568 = vmatprep.subr.bf16.mxu0 0
  %569 = vmatpush2.bf16.msra.mxu0 0
  %570 = vmatprep.subr.bf16.mxu0 0
  %571 = vmatpush2.bf16.msra.mxu0 0
  %572 = vmatprep.subr.bf16.mxu0 0
  %573 = vmatpush2.bf16.msra.mxu0 0
  %574 = vmatprep.subr.bf16.mxu0 0
  %575 = vmatpush2.bf16.msra.mxu0 0
  %576 = vmatprep.subr.bf16.mxu0 0
  %577 = vmatpush2.bf16.msra.mxu0 0
  %578 = vmatprep.subr.bf16.mxu0 0
  %579 = vmatpush2.bf16.msra.mxu0 0
  %580 = vmatprep.subr.bf16.mxu0 0
  %581 = vmatpush2.bf16.msra.mxu0 0
  %582 = vmatprep.subr.bf16.mxu0 0
  %583 = vmatpush2.bf16.msra.mxu0 0
  %584 = vmatprep.mubr.bf16.mxu0 0
  %585 = vmatmul.mubr.bf16.gmra.mxu0 %v547
  %v586 = vpop.f32.mrf.mxu0
  %v587 = vadd.f32 0.0, %v586
  %v588 = vpop.f32.mrf.mxu0
  %v589 = vpop.f32.mrf.mxu0
  %v590 = vpop.f32.mrf.mxu0
  %591 = vdwg.mxu0
  %v592 = vadd.f32 %v551, %v587
  %v593 = vtanh.pop %v592
  %v594 = vpack.c.bf16 %v593, %v593
  %s595 = scalar_lea.vmem %s4, 28
  %596 = vst [vmem:[%s595] sm:$0xf] %v594
  %597 = vst [vmem:[#allocation2] sm:$0xff] %v593
  // Predicated region
  $region22: #{rnn_freq_and_time_forward.11} parent=0 // pred_check
    _
  $region23: #{rnn_freq_and_time_forward.11} parent=0 // pred_check_branch
    %599 = sbr.rel (0) target = $region25
  $region24: #{rnn_freq_and_time_forward.11} parent=0 // pred_region
    _
  $region25: #{rnn_freq_and_time_forward.11} parent=0 // pred_fallthru
    _
  // Predicated region
  $region26: #{rnn_freq_and_time_forward.11} parent=0 // pred_check
    _
  $region27: #{rnn_freq_and_time_forward.11} parent=0 // pred_check_branch
    %601 = sbr.rel (0) target = $region29
  $region28: #{rnn_freq_and_time_forward.11} parent=0 // pred_region
    _
  $region29: #{rnn_freq_and_time_forward.11} parent=0 // pred_fallthru
    _

// kernel: rnn_freq_and_time_forward.9
$region0: #{rnn_freq_and_time_forward.9}
  #allocation0 [shape = 'u32[]', space=smem, size = 0x4, offset = 0x4, fixed_abs, tag = 'smem constant byte address 0x4 - core index']
  #allocation1 [shape = 'u32[144,128]{1,0:T(1,128)}', space=vmem, size = 0x12000, scoped, tag = 'internal scratch']
  #allocation2 [shape = 'f32[8,128]{1,0:T(8,128)}', space=vmem, size = 0x1000, scoped, tag = 'scratch operand']
  #allocation3 [shape = 'f32[8,8,128]{2,1,0:T(8,128)}', space=vmem, size = 0x8000, scoped, tag = 'scratch operand']
  %s0 = inlined_call_operand.vmem [shape: bf16[8,8,8], index: 0, kind: input, shape index: {}]
  %s1 = inlined_call_operand.vmem [shape: bf16[8,128], index: 1, kind: input, shape index: {}]
  %s2 = inlined_call_operand.vmem [shape: f32[1,128], index: 2, kind: input, shape index: {}]
  %s3 = inlined_call_operand.vmem [shape: bf16[128,128], index: 3, kind: input, shape index: {}]
  %s4 = inlined_call_operand.vmem [shape: bf16[8,8,128], index: 4, kind: output, shape index: {}]
  %s5 = sld [smem:[#allocation0]]
  $region30: #{rnn_freq_and_time_forward.9} parent=0
    _
  %s7 = ssub.s32 1, %s5
  %s8 = scalar_select 0, %s7, %s5
  // Predicated region
  $region2: #{rnn_freq_and_time_forward.9} parent=0 // pred_check
    _
  $region3: #{rnn_freq_and_time_forward.9} parent=0 // pred_check_branch
    %10 = sbr.rel (0) target = $region5
  $region4: #{rnn_freq_and_time_forward.9} parent=0 // pred_region
    _
  $region5: #{rnn_freq_and_time_forward.9} parent=0 // pred_fallthru
    _
  // Predicated region
  $region6: #{rnn_freq_and_time_forward.9} parent=0 // pred_check
    _
  $region7: #{rnn_freq_and_time_forward.9} parent=0 // pred_check_branch
    %12 = sbr.rel (0) target = $region9
  $region8: #{rnn_freq_and_time_forward.9} parent=0 // pred_region
    _
  $region9: #{rnn_freq_and_time_forward.9} parent=0 // pred_fallthru
    _
  // Predicated region
  $region10: #{rnn_freq_and_time_forward.9} parent=0 // pred_check
    _
  $region11: #{rnn_freq_and_time_forward.9} parent=0 // pred_check_branch
    %14 = sbr.rel (0) target = $region13
  $region12: #{rnn_freq_and_time_forward.9} parent=0 // pred_region
    _
  $region13: #{rnn_freq_and_time_forward.9} parent=0 // pred_fallthru
    _
  // Predicated region
  $region14: #{rnn_freq_and_time_forward.9} parent=0 // pred_check
    _
  $region15: #{rnn_freq_and_time_forward.9} parent=0 // pred_check_branch
    %16 = sbr.rel (0) target = $region17
  $region16: #{rnn_freq_and_time_forward.9} parent=0 // pred_region
    _
  $region17: #{rnn_freq_and_time_forward.9} parent=0 // pred_fallthru
    _
  %p18 = scmp.eq.s32.totalorder 0, 0
  // Predicated region
  $region18: #{rnn_freq_and_time_forward.9} parent=0 // pred_check
    %p19 = pneg %p18
  $region19: #{rnn_freq_and_time_forward.9} parent=0 // pred_check_branch
    %21 = sbr.rel (%p19) target = $region21
  $region20: #{rnn_freq_and_time_forward.9} parent=0 // pred_region
    %22 = vst [vmem:[#allocation2] sm:$0xff] 0.0
  $region21: #{rnn_freq_and_time_forward.9} parent=0 // pred_fallthru
    _
  %v23 = vld [vmem:[%s0] sm:$0xf]
  %v24 = vld [vmem:[%s0 + $0x4] sm:$0xf]
  %v25 = vld [vmem:[%s0 + $0x8] sm:$0xf]
  %v26 = vld [vmem:[%s0 + $0xc] sm:$0xf]
  %v27 = vld [vmem:[%s0 + $0x10] sm:$0xf]
  %v28 = vld [vmem:[%s0 + $0x14] sm:$0xf]
  %v29 = vld [vmem:[%s0 + $0x18] sm:$0xf]
  %v30 = vld [vmem:[%s0 + $0x1c] sm:$0xf]
  %v31 = vld [vmem:[%s1] sm:$0xf]
  %v40 = vunpack.c.l.b16 %v23
  %v41 = vunpack.c.l.b16 %v24
  %v42 = vunpack.c.l.b16 %v25
  %v43 = vunpack.c.l.b16 %v26
  %v44 = vunpack.c.l.b16 %v27
  %v45 = vunpack.c.l.b16 %v28
  %v46 = vunpack.c.l.b16 %v29
  %v47 = vunpack.c.l.b16 %v30
  %v48 = vpack.c.b16 %v41, %v40
  %v49 = vpack.c.b16 %v43, %v42
  %v50 = vpack.c.b16 %v45, %v44
  %v51 = vpack.c.b16 %v47, %v46
  %vm52 = vcmask 64512
  %v54 = vsel %vm52, %v48, 0
  %v57 = vsel %vm52, %v49, 0
  %v60 = vsel %vm52, %v50, 0
  %v63 = vsel %vm52, %v51, 0
  %vm65 = vcmask 1043456
  %v67 = vsel %vm65, %v31, 0
  %69 = vmatprep.subr.bf16.mxu0 0
  %70 = vmatpush1.bf16.msra.mxu0 0
  %71 = vmatprep.subr.bf16.mxu0 0
  %72 = vmatpush1.bf16.msra.mxu0 0
  %73 = vmatprep.subr.bf16.mxu0 0
  %74 = vmatpush1.bf16.msra.mxu0 0
  %75 = vmatprep.subr.bf16.mxu0 0
  %76 = vmatpush1.bf16.msra.mxu0 0
  %77 = vmatprep.subr.bf16.mxu0 0
  %78 = vmatpush1.bf16.msra.mxu0 0
  %79 = vmatprep.subr.bf16.mxu0 0
  %80 = vmatpush1.bf16.msra.mxu0 0
  %81 = vmatprep.subr.bf16.mxu0 0
  %82 = vmatpush1.bf16.msra.mxu0 0
  %83 = vmatprep.subr.bf16.mxu0 0
  %84 = vmatpush1.bf16.msra.mxu0 %v67
  %85 = vmatprep.subr.bf16.mxu0 0
  %86 = vmatpush2.bf16.msra.mxu0 0
  %87 = vmatprep.subr.bf16.mxu0 0
  %88 = vmatpush2.bf16.msra.mxu0 0
  %89 = vmatprep.subr.bf16.mxu0 0
  %90 = vmatpush2.bf16.msra.mxu0 0
  %91 = vmatprep.subr.bf16.mxu0 0
  %92 = vmatpush2.bf16.msra.mxu0 0
  %93 = vmatprep.subr.bf16.mxu0 0
  %94 = vmatpush2.bf16.msra.mxu0 0
  %95 = vmatprep.subr.bf16.mxu0 0
  %96 = vmatpush2.bf16.msra.mxu0 0
  %97 = vmatprep.subr.bf16.mxu0 0
  %98 = vmatpush2.bf16.msra.mxu0 0
  %99 = vmatprep.subr.bf16.mxu0 0
  %100 = vmatpush2.bf16.msra.mxu0 0
  %101 = vmatprep.mubr.bf16.mxu0 0
  %102 = vmatmul.mubr.bf16.gmra.mxu0 %v54
  %v103 = vpop.f32.mrf.mxu0
  %v104 = vadd.f32 0.0, %v103
  %v105 = vpop.f32.mrf.mxu0
  %v106 = vpop.f32.mrf.mxu0
  %v107 = vadd.f32 0.0, %v106
  %v108 = vpop.f32.mrf.mxu0
  %109 = vmatprep.mubr.bf16.mxu0 0
  %110 = vmatmul.mubr.bf16.gmra.mxu0 %v57
  %v111 = vpop.f32.mrf.mxu0
  %v112 = vadd.f32 0.0, %v111
  %v113 = vpop.f32.mrf.mxu0
  %v114 = vpop.f32.mrf.mxu0
  %v115 = vadd.f32 0.0, %v114
  %v116 = vpop.f32.mrf.mxu0
  %117 = vmatprep.mubr.bf16.mxu0 0
  %118 = vmatmul.mubr.bf16.gmra.mxu0 %v60
  %v119 = vpop.f32.mrf.mxu0
  %v120 = vadd.f32 0.0, %v119
  %v121 = vpop.f32.mrf.mxu0
  %v122 = vpop.f32.mrf.mxu0
  %v123 = vadd.f32 0.0, %v122
  %v124 = vpop.f32.mrf.mxu0
  %125 = vmatprep.mubr.bf16.mxu0 0
  %126 = vmatmul.mubr.bf16.gmra.mxu0 %v63
  %v127 = vpop.f32.mrf.mxu0
  %v128 = vadd.f32 0.0, %v127
  %v129 = vpop.f32.mrf.mxu0
  %v130 = vpop.f32.mrf.mxu0
  %v131 = vadd.f32 0.0, %v130
  %v132 = vpop.f32.mrf.mxu0
  %133 = vdwg.mxu0
  %v134 = vld [vmem:[%s2] sm:$0x1]
  %v136 = vlaneseq
  %v137 = vshrl.u32 %v136, 7
  %v138 = vsub.s32 0, %v137
  %v139 = vrot.slane %v134, %v138
  %v141 = vadd.f32 %v104, %v139
  %v142 = vadd.f32 %v107, %v139
  %v143 = vadd.f32 %v112, %v139
  %v144 = vadd.f32 %v115, %v139
  %v145 = vadd.f32 %v120, %v139
  %v146 = vadd.f32 %v123, %v139
  %v147 = vadd.f32 %v128, %v139
  %v148 = vadd.f32 %v131, %v139
  %149 = vst [vmem:[#allocation3] sm:$0xff] %v141
  %150 = vst [vmem:[#allocation3 + $0x8] sm:$0xff] %v142
  %151 = vst [vmem:[#allocation3 + $0x10] sm:$0xff] %v143
  %152 = vst [vmem:[#allocation3 + $0x18] sm:$0xff] %v144
  %153 = vst [vmem:[#allocation3 + $0x20] sm:$0xff] %v145
  %154 = vst [vmem:[#allocation3 + $0x28] sm:$0xff] %v146
  %155 = vst [vmem:[#allocation3 + $0x30] sm:$0xff] %v147
  %156 = vst [vmem:[#allocation3 + $0x38] sm:$0xff] %v148
  %v157 = vld [vmem:[%s3] sm:$0xf]
  %v158 = vld [vmem:[%s3 + $0x4] sm:$0xf]
  %v159 = vld [vmem:[%s3 + $0x8] sm:$0xf]
  %v160 = vld [vmem:[%s3 + $0xc] sm:$0xf]
  %v161 = vld [vmem:[%s3 + $0x10] sm:$0xf]
  %v162 = vld [vmem:[%s3 + $0x14] sm:$0xf]
  %v163 = vld [vmem:[%s3 + $0x18] sm:$0xf]
  %v164 = vld [vmem:[%s3 + $0x1c] sm:$0xf]
  %v165 = vld [vmem:[%s3 + $0x20] sm:$0xf]
  %v166 = vld [vmem:[%s3 + $0x24] sm:$0xf]
  %v167 = vld [vmem:[%s3 + $0x28] sm:$0xf]
  %v168 = vld [vmem:[%s3 + $0x2c] sm:$0xf]
  %v169 = vld [vmem:[%s3 + $0x30] sm:$0xf]
  %v170 = vld [vmem:[%s3 + $0x34] sm:$0xf]
  %v171 = vld [vmem:[%s3 + $0x38] sm:$0xf]
  %v172 = vld [vmem:[%s3 + $0x3c] sm:$0xf]
  %v173 = vld [vmem:[#allocation2] sm:$0xff]
  %v174 = vld [vmem:[#allocation3] sm:$0xff]
  %v175 = vpack.c.bf16 %v173, %v173
  %v192 = vunpack.c.l.b16 %v157
  %v193 = vunpack.c.l.b16 %v158
  %v194 = vunpack.c.l.b16 %v159
  %v195 = vunpack.c.l.b16 %v160
  %v196 = vunpack.c.l.b16 %v161
  %v197 = vunpack.c.l.b16 %v162
  %v198 = vunpack.c.l.b16 %v163
  %v199 = vunpack.c.l.b16 %v164
  %v200 = vunpack.c.l.b16 %v165
  %v201 = vunpack.c.l.b16 %v166
  %v202 = vunpack.c.l.b16 %v167
  %v203 = vunpack.c.l.b16 %v168
  %v204 = vunpack.c.l.b16 %v169
  %v205 = vunpack.c.l.b16 %v170
  %v206 = vunpack.c.l.b16 %v171
  %v207 = vunpack.c.l.b16 %v172
  %v208 = vpack.c.b16 %v193, %v192
  %v209 = vpack.c.b16 %v195, %v194
  %v210 = vpack.c.b16 %v197, %v196
  %v211 = vpack.c.b16 %v199, %v198
  %v212 = vpack.c.b16 %v201, %v200
  %v213 = vpack.c.b16 %v203, %v202
  %v214 = vpack.c.b16 %v205, %v204
  %v215 = vpack.c.b16 %v207, %v206
  %224 = vmatprep.subr.bf16.mxu0 0
  %225 = vmatpush1.bf16.msra.mxu0 %v215
  %226 = vmatprep.subr.bf16.mxu0 0
  %227 = vmatpush1.bf16.msra.mxu0 %v214
  %228 = vmatprep.subr.bf16.mxu0 0
  %229 = vmatpush1.bf16.msra.mxu0 %v213
  %230 = vmatprep.subr.bf16.mxu0 0
  %231 = vmatpush1.bf16.msra.mxu0 %v212
  %232 = vmatprep.subr.bf16.mxu0 0
  %233 = vmatpush1.bf16.msra.mxu0 %v211
  %234 = vmatprep.subr.bf16.mxu0 0
  %235 = vmatpush1.bf16.msra.mxu0 %v210
  %236 = vmatprep.subr.bf16.mxu0 0
  %237 = vmatpush1.bf16.msra.mxu0 %v209
  %238 = vmatprep.subr.bf16.mxu0 0
  %239 = vmatpush1.bf16.msra.mxu0 %v208
  %240 = vmatprep.subr.bf16.mxu0 0
  %241 = vmatpush2.bf16.msra.mxu0 0
  %242 = vmatprep.subr.bf16.mxu0 0
  %243 = vmatpush2.bf16.msra.mxu0 0
  %244 = vmatprep.subr.bf16.mxu0 0
  %245 = vmatpush2.bf16.msra.mxu0 0
  %246 = vmatprep.subr.bf16.mxu0 0
  %247 = vmatpush2.bf16.msra.mxu0 0
  %248 = vmatprep.subr.bf16.mxu0 0
  %249 = vmatpush2.bf16.msra.mxu0 0
  %250 = vmatprep.subr.bf16.mxu0 0
  %251 = vmatpush2.bf16.msra.mxu0 0
  %252 = vmatprep.subr.bf16.mxu0 0
  %253 = vmatpush2.bf16.msra.mxu0 0
  %254 = vmatprep.subr.bf16.mxu0 0
  %255 = vmatpush2.bf16.msra.mxu0 0
  %256 = vmatprep.mubr.bf16.mxu0 0
  %257 = vmatmul.mubr.bf16.gmra.mxu0 %v175
  %v258 = vpop.f32.mrf.mxu0
  %v259 = vadd.f32 0.0, %v258
  %v260 = vpop.f32.mrf.mxu0
  %v261 = vpop.f32.mrf.mxu0
  %v262 = vpop.f32.mrf.mxu0
  %263 = vdwg.mxu0
  %v264 = vadd.f32 %v174, %v259
  %v265 = vtanh.pop %v264
  %v266 = vpack.c.bf16 %v265, %v265
  %267 = vst [vmem:[%s4] sm:$0xf] %v266
  %s268 = scalar_lea.vmem [#allocation3], 8
  %v269 = vld [vmem:[%s268] sm:$0xff]
  %270 = vmatprep.subr.bf16.mxu0 0
  %271 = vmatpush1.bf16.msra.mxu0 %v215
  %272 = vmatprep.subr.bf16.mxu0 0
  %273 = vmatpush1.bf16.msra.mxu0 %v214
  %274 = vmatprep.subr.bf16.mxu0 0
  %275 = vmatpush1.bf16.msra.mxu0 %v213
  %276 = vmatprep.subr.bf16.mxu0 0
  %277 = vmatpush1.bf16.msra.mxu0 %v212
  %278 = vmatprep.subr.bf16.mxu0 0
  %279 = vmatpush1.bf16.msra.mxu0 %v211
  %280 = vmatprep.subr.bf16.mxu0 0
  %281 = vmatpush1.bf16.msra.mxu0 %v210
  %282 = vmatprep.subr.bf16.mxu0 0
  %283 = vmatpush1.bf16.msra.mxu0 %v209
  %284 = vmatprep.subr.bf16.mxu0 0
  %285 = vmatpush1.bf16.msra.mxu0 %v208
  %286 = vmatprep.subr.bf16.mxu0 0
  %287 = vmatpush2.bf16.msra.mxu0 0
  %288 = vmatprep.subr.bf16.mxu0 0
  %289 = vmatpush2.bf16.msra.mxu0 0
  %290 = vmatprep.subr.bf16.mxu0 0
  %291 = vmatpush2.bf16.msra.mxu0 0
  %292 = vmatprep.subr.bf16.mxu0 0
  %293 = vmatpush2.bf16.msra.mxu0 0
  %294 = vmatprep.subr.bf16.mxu0 0
  %295 = vmatpush2.bf16.msra.mxu0 0
  %296 = vmatprep.subr.bf16.mxu0 0
  %297 = vmatpush2.bf16.msra.mxu0 0
  %298 = vmatprep.subr.bf16.mxu0 0
  %299 = vmatpush2.bf16.msra.mxu0 0
  %300 = vmatprep.subr.bf16.mxu0 0
  %301 = vmatpush2.bf16.msra.mxu0 0
  %302 = vmatprep.mubr.bf16.mxu0 0
  %303 = vmatmul.mubr.bf16.gmra.mxu0 %v266
  %v304 = vpop.f32.mrf.mxu0
  %v305 = vadd.f32 0.0, %v304
  %v306 = vpop.f32.mrf.mxu0
  %v307 = vpop.f32.mrf.mxu0
  %v308 = vpop.f32.mrf.mxu0
  %309 = vdwg.mxu0
  %v310 = vadd.f32 %v269, %v305
  %v311 = vtanh.pop %v310
  %v312 = vpack.c.bf16 %v311, %v311
  %s313 = scalar_lea.vmem %s4, 4
  %314 = vst [vmem:[%s313] sm:$0xf] %v312
  %s315 = scalar_lea.vmem [#allocation3], 16
  %v316 = vld [vmem:[%s315] sm:$0xff]
  %317 = vmatprep.subr.bf16.mxu0 0
  %318 = vmatpush1.bf16.msra.mxu0 %v215
  %319 = vmatprep.subr.bf16.mxu0 0
  %320 = vmatpush1.bf16.msra.mxu0 %v214
  %321 = vmatprep.subr.bf16.mxu0 0
  %322 = vmatpush1.bf16.msra.mxu0 %v213
  %323 = vmatprep.subr.bf16.mxu0 0
  %324 = vmatpush1.bf16.msra.mxu0 %v212
  %325 = vmatprep.subr.bf16.mxu0 0
  %326 = vmatpush1.bf16.msra.mxu0 %v211
  %327 = vmatprep.subr.bf16.mxu0 0
  %328 = vmatpush1.bf16.msra.mxu0 %v210
  %329 = vmatprep.subr.bf16.mxu0 0
  %330 = vmatpush1.bf16.msra.mxu0 %v209
  %331 = vmatprep.subr.bf16.mxu0 0
  %332 = vmatpush1.bf16.msra.mxu0 %v208
  %333 = vmatprep.subr.bf16.mxu0 0
  %334 = vmatpush2.bf16.msra.mxu0 0
  %335 = vmatprep.subr.bf16.mxu0 0
  %336 = vmatpush2.bf16.msra.mxu0 0
  %337 = vmatprep.subr.bf16.mxu0 0
  %338 = vmatpush2.bf16.msra.mxu0 0
  %339 = vmatprep.subr.bf16.mxu0 0
  %340 = vmatpush2.bf16.msra.mxu0 0
  %341 = vmatprep.subr.bf16.mxu0 0
  %342 = vmatpush2.bf16.msra.mxu0 0
  %343 = vmatprep.subr.bf16.mxu0 0
  %344 = vmatpush2.bf16.msra.mxu0 0
  %345 = vmatprep.subr.bf16.mxu0 0
  %346 = vmatpush2.bf16.msra.mxu0 0
  %347 = vmatprep.subr.bf16.mxu0 0
  %348 = vmatpush2.bf16.msra.mxu0 0
  %349 = vmatprep.mubr.bf16.mxu0 0
  %350 = vmatmul.mubr.bf16.gmra.mxu0 %v312
  %v351 = vpop.f32.mrf.mxu0
  %v352 = vadd.f32 0.0, %v351
  %v353 = vpop.f32.mrf.mxu0
  %v354 = vpop.f32.mrf.mxu0
  %v355 = vpop.f32.mrf.mxu0
  %356 = vdwg.mxu0
  %v357 = vadd.f32 %v316, %v352
  %v358 = vtanh.pop %v357
  %v359 = vpack.c.bf16 %v358, %v358
  %s360 = scalar_lea.vmem %s4, 8
  %361 = vst [vmem:[%s360] sm:$0xf] %v359
  %s362 = scalar_lea.vmem [#allocation3], 24
  %v363 = vld [vmem:[%s362] sm:$0xff]
  %364 = vmatprep.subr.bf16.mxu0 0
  %365 = vmatpush1.bf16.msra.mxu0 %v215
  %366 = vmatprep.subr.bf16.mxu0 0
  %367 = vmatpush1.bf16.msra.mxu0 %v214
  %368 = vmatprep.subr.bf16.mxu0 0
  %369 = vmatpush1.bf16.msra.mxu0 %v213
  %370 = vmatprep.subr.bf16.mxu0 0
  %371 = vmatpush1.bf16.msra.mxu0 %v212
  %372 = vmatprep.subr.bf16.mxu0 0
  %373 = vmatpush1.bf16.msra.mxu0 %v211
  %374 = vmatprep.subr.bf16.mxu0 0
  %375 = vmatpush1.bf16.msra.mxu0 %v210
  %376 = vmatprep.subr.bf16.mxu0 0
  %377 = vmatpush1.bf16.msra.mxu0 %v209
  %378 = vmatprep.subr.bf16.mxu0 0
  %379 = vmatpush1.bf16.msra.mxu0 %v208
  %380 = vmatprep.subr.bf16.mxu0 0
  %381 = vmatpush2.bf16.msra.mxu0 0
  %382 = vmatprep.subr.bf16.mxu0 0
  %383 = vmatpush2.bf16.msra.mxu0 0
  %384 = vmatprep.subr.bf16.mxu0 0
  %385 = vmatpush2.bf16.msra.mxu0 0
  %386 = vmatprep.subr.bf16.mxu0 0
  %387 = vmatpush2.bf16.msra.mxu0 0
  %388 = vmatprep.subr.bf16.mxu0 0
  %389 = vmatpush2.bf16.msra.mxu0 0
  %390 = vmatprep.subr.bf16.mxu0 0
  %391 = vmatpush2.bf16.msra.mxu0 0
  %392 = vmatprep.subr.bf16.mxu0 0
  %393 = vmatpush2.bf16.msra.mxu0 0
  %394 = vmatprep.subr.bf16.mxu0 0
  %395 = vmatpush2.bf16.msra.mxu0 0
  %396 = vmatprep.mubr.bf16.mxu0 0
  %397 = vmatmul.mubr.bf16.gmra.mxu0 %v359
  %v398 = vpop.f32.mrf.mxu0
  %v399 = vadd.f32 0.0, %v398
  %v400 = vpop.f32.mrf.mxu0
  %v401 = vpop.f32.mrf.mxu0
  %v402 = vpop.f32.mrf.mxu0
  %403 = vdwg.mxu0
  %v404 = vadd.f32 %v363, %v399
  %v405 = vtanh.pop %v404
  %v406 = vpack.c.bf16 %v405, %v405
  %s407 = scalar_lea.vmem %s4, 12
  %408 = vst [vmem:[%s407] sm:$0xf] %v406
  %s409 = scalar_lea.vmem [#allocation3], 32
  %v410 = vld [vmem:[%s409] sm:$0xff]
  %411 = vmatprep.subr.bf16.mxu0 0
  %412 = vmatpush1.bf16.msra.mxu0 %v215
  %413 = vmatprep.subr.bf16.mxu0 0
  %414 = vmatpush1.bf16.msra.mxu0 %v214
  %415 = vmatprep.subr.bf16.mxu0 0
  %416 = vmatpush1.bf16.msra.mxu0 %v213
  %417 = vmatprep.subr.bf16.mxu0 0
  %418 = vmatpush1.bf16.msra.mxu0 %v212
  %419 = vmatprep.subr.bf16.mxu0 0
  %420 = vmatpush1.bf16.msra.mxu0 %v211
  %421 = vmatprep.subr.bf16.mxu0 0
  %422 = vmatpush1.bf16.msra.mxu0 %v210
  %423 = vmatprep.subr.bf16.mxu0 0
  %424 = vmatpush1.bf16.msra.mxu0 %v209
  %425 = vmatprep.subr.bf16.mxu0 0
  %426 = vmatpush1.bf16.msra.mxu0 %v208
  %427 = vmatprep.subr.bf16.mxu0 0
  %428 = vmatpush2.bf16.msra.mxu0 0
  %429 = vmatprep.subr.bf16.mxu0 0
  %430 = vmatpush2.bf16.msra.mxu0 0
  %431 = vmatprep.subr.bf16.mxu0 0
  %432 = vmatpush2.bf16.msra.mxu0 0
  %433 = vmatprep.subr.bf16.mxu0 0
  %434 = vmatpush2.bf16.msra.mxu0 0
  %435 = vmatprep.subr.bf16.mxu0 0
  %436 = vmatpush2.bf16.msra.mxu0 0
  %437 = vmatprep.subr.bf16.mxu0 0
  %438 = vmatpush2.bf16.msra.mxu0 0
  %439 = vmatprep.subr.bf16.mxu0 0
  %440 = vmatpush2.bf16.msra.mxu0 0
  %441 = vmatprep.subr.bf16.mxu0 0
  %442 = vmatpush2.bf16.msra.mxu0 0
  %443 = vmatprep.mubr.bf16.mxu0 0
  %444 = vmatmul.mubr.bf16.gmra.mxu0 %v406
  %v445 = vpop.f32.mrf.mxu0
  %v446 = vadd.f32 0.0, %v445
  %v447 = vpop.f32.mrf.mxu0
  %v448 = vpop.f32.mrf.mxu0
  %v449 = vpop.f32.mrf.mxu0
  %450 = vdwg.mxu0
  %v451 = vadd.f32 %v410, %v446
  %v452 = vtanh.pop %v451
  %v453 = vpack.c.bf16 %v452, %v452
  %s454 = scalar_lea.vmem %s4, 16
  %455 = vst [vmem:[%s454] sm:$0xf] %v453
  %s456 = scalar_lea.vmem [#allocation3], 40
  %v457 = vld [vmem:[%s456] sm:$0xff]
  %458 = vmatprep.subr.bf16.mxu0 0
  %459 = vmatpush1.bf16.msra.mxu0 %v215
  %460 = vmatprep.subr.bf16.mxu0 0
  %461 = vmatpush1.bf16.msra.mxu0 %v214
  %462 = vmatprep.subr.bf16.mxu0 0
  %463 = vmatpush1.bf16.msra.mxu0 %v213
  %464 = vmatprep.subr.bf16.mxu0 0
  %465 = vmatpush1.bf16.msra.mxu0 %v212
  %466 = vmatprep.subr.bf16.mxu0 0
  %467 = vmatpush1.bf16.msra.mxu0 %v211
  %468 = vmatprep.subr.bf16.mxu0 0
  %469 = vmatpush1.bf16.msra.mxu0 %v210
  %470 = vmatprep.subr.bf16.mxu0 0
  %471 = vmatpush1.bf16.msra.mxu0 %v209
  %472 = vmatprep.subr.bf16.mxu0 0
  %473 = vmatpush1.bf16.msra.mxu0 %v208
  %474 = vmatprep.subr.bf16.mxu0 0
  %475 = vmatpush2.bf16.msra.mxu0 0
  %476 = vmatprep.subr.bf16.mxu0 0
  %477 = vmatpush2.bf16.msra.mxu0 0
  %478 = vmatprep.subr.bf16.mxu0 0
  %479 = vmatpush2.bf16.msra.mxu0 0
  %480 = vmatprep.subr.bf16.mxu0 0
  %481 = vmatpush2.bf16.msra.mxu0 0
  %482 = vmatprep.subr.bf16.mxu0 0
  %483 = vmatpush2.bf16.msra.mxu0 0
  %484 = vmatprep.subr.bf16.mxu0 0
  %485 = vmatpush2.bf16.msra.mxu0 0
  %486 = vmatprep.subr.bf16.mxu0 0
  %487 = vmatpush2.bf16.msra.mxu0 0
  %488 = vmatprep.subr.bf16.mxu0 0
  %489 = vmatpush2.bf16.msra.mxu0 0
  %490 = vmatprep.mubr.bf16.mxu0 0
  %491 = vmatmul.mubr.bf16.gmra.mxu0 %v453
  %v492 = vpop.f32.mrf.mxu0
  %v493 = vadd.f32 0.0, %v492
  %v494 = vpop.f32.mrf.mxu0
  %v495 = vpop.f32.mrf.mxu0
  %v496 = vpop.f32.mrf.mxu0
  %497 = vdwg.mxu0
  %v498 = vadd.f32 %v457, %v493
  %v499 = vtanh.pop %v498
  %v500 = vpack.c.bf16 %v499, %v499
  %s501 = scalar_lea.vmem %s4, 20
  %502 = vst [vmem:[%s501] sm:$0xf] %v500
  %s503 = scalar_lea.vmem [#allocation3], 48
  %v504 = vld [vmem:[%s503] sm:$0xff]
  %505 = vmatprep.subr.bf16.mxu0 0
  %506 = vmatpush1.bf16.msra.mxu0 %v215
  %507 = vmatprep.subr.bf16.mxu0 0
  %508 = vmatpush1.bf16.msra.mxu0 %v214
  %509 = vmatprep.subr.bf16.mxu0 0
  %510 = vmatpush1.bf16.msra.mxu0 %v213
  %511 = vmatprep.subr.bf16.mxu0 0
  %512 = vmatpush1.bf16.msra.mxu0 %v212
  %513 = vmatprep.subr.bf16.mxu0 0
  %514 = vmatpush1.bf16.msra.mxu0 %v211
  %515 = vmatprep.subr.bf16.mxu0 0
  %516 = vmatpush1.bf16.msra.mxu0 %v210
  %517 = vmatprep.subr.bf16.mxu0 0
  %518 = vmatpush1.bf16.msra.mxu0 %v209
  %519 = vmatprep.subr.bf16.mxu0 0
  %520 = vmatpush1.bf16.msra.mxu0 %v208
  %521 = vmatprep.subr.bf16.mxu0 0
  %522 = vmatpush2.bf16.msra.mxu0 0
  %523 = vmatprep.subr.bf16.mxu0 0
  %524 = vmatpush2.bf16.msra.mxu0 0
  %525 = vmatprep.subr.bf16.mxu0 0
  %526 = vmatpush2.bf16.msra.mxu0 0
  %527 = vmatprep.subr.bf16.mxu0 0
  %528 = vmatpush2.bf16.msra.mxu0 0
  %529 = vmatprep.subr.bf16.mxu0 0
  %530 = vmatpush2.bf16.msra.mxu0 0
  %531 = vmatprep.subr.bf16.mxu0 0
  %532 = vmatpush2.bf16.msra.mxu0 0
  %533 = vmatprep.subr.bf16.mxu0 0
  %534 = vmatpush2.bf16.msra.mxu0 0
  %535 = vmatprep.subr.bf16.mxu0 0
  %536 = vmatpush2.bf16.msra.mxu0 0
  %537 = vmatprep.mubr.bf16.mxu0 0
  %538 = vmatmul.mubr.bf16.gmra.mxu0 %v500
  %v539 = vpop.f32.mrf.mxu0
  %v540 = vadd.f32 0.0, %v539
  %v541 = vpop.f32.mrf.mxu0
  %v542 = vpop.f32.mrf.mxu0
  %v543 = vpop.f32.mrf.mxu0
  %544 = vdwg.mxu0
  %v545 = vadd.f32 %v504, %v540
  %v546 = vtanh.pop %v545
  %v547 = vpack.c.bf16 %v546, %v546
  %s548 = scalar_lea.vmem %s4, 24
  %549 = vst [vmem:[%s548] sm:$0xf] %v547
  %s550 = scalar_lea.vmem [#allocation3], 56
  %v551 = vld [vmem:[%s550] sm:$0xff]
  %552 = vmatprep.subr.bf16.mxu0 0
  %553 = vmatpush1.bf16.msra.mxu0 %v215
  %554 = vmatprep.subr.bf16.mxu0 0
  %555 = vmatpush1.bf16.msra.mxu0 %v214
  %556 = vmatprep.subr.bf16.mxu0 0
  %557 = vmatpush1.bf16.msra.mxu0 %v213
  %558 = vmatprep.subr.bf16.mxu0 0
  %559 = vmatpush1.bf16.msra.mxu0 %v212
  %560 = vmatprep.subr.bf16.mxu0 0
  %561 = vmatpush1.bf16.msra.mxu0 %v211
  %562 = vmatprep.subr.bf16.mxu0 0
  %563 = vmatpush1.bf16.msra.mxu0 %v210
  %564 = vmatprep.subr.bf16.mxu0 0
  %565 = vmatpush1.bf16.msra.mxu0 %v209
  %566 = vmatprep.subr.bf16.mxu0 0
  %567 = vmatpush1.bf16.msra.mxu0 %v208
  %568 = vmatprep.subr.bf16.mxu0 0
  %569 = vmatpush2.bf16.msra.mxu0 0
  %570 = vmatprep.subr.bf16.mxu0 0
  %571 = vmatpush2.bf16.msra.mxu0 0
  %572 = vmatprep.subr.bf16.mxu0 0
  %573 = vmatpush2.bf16.msra.mxu0 0
  %574 = vmatprep.subr.bf16.mxu0 0
  %575 = vmatpush2.bf16.msra.mxu0 0
  %576 = vmatprep.subr.bf16.mxu0 0
  %577 = vmatpush2.bf16.msra.mxu0 0
  %578 = vmatprep.subr.bf16.mxu0 0
  %579 = vmatpush2.bf16.msra.mxu0 0
  %580 = vmatprep.subr.bf16.mxu0 0
  %581 = vmatpush2.bf16.msra.mxu0 0
  %582 = vmatprep.subr.bf16.mxu0 0
  %583 = vmatpush2.bf16.msra.mxu0 0
  %584 = vmatprep.mubr.bf16.mxu0 0
  %585 = vmatmul.mubr.bf16.gmra.mxu0 %v547
  %v586 = vpop.f32.mrf.mxu0
  %v587 = vadd.f32 0.0, %v586
  %v588 = vpop.f32.mrf.mxu0
  %v589 = vpop.f32.mrf.mxu0
  %v590 = vpop.f32.mrf.mxu0
  %591 = vdwg.mxu0
  %v592 = vadd.f32 %v551, %v587
  %v593 = vtanh.pop %v592
  %v594 = vpack.c.bf16 %v593, %v593
  %s595 = scalar_lea.vmem %s4, 28
  %596 = vst [vmem:[%s595] sm:$0xf] %v594
  %597 = vst [vmem:[#allocation2] sm:$0xff] %v593
  // Predicated region
  $region22: #{rnn_freq_and_time_forward.9} parent=0 // pred_check
    _
  $region23: #{rnn_freq_and_time_forward.9} parent=0 // pred_check_branch
    %599 = sbr.rel (0) target = $region25
  $region24: #{rnn_freq_and_time_forward.9} parent=0 // pred_region
    _
  $region25: #{rnn_freq_and_time_forward.9} parent=0 // pred_fallthru
    _
  // Predicated region
  $region26: #{rnn_freq_and_time_forward.9} parent=0 // pred_check
    _
  $region27: #{rnn_freq_and_time_forward.9} parent=0 // pred_check_branch
    %601 = sbr.rel (0) target = $region29
  $region28: #{rnn_freq_and_time_forward.9} parent=0 // pred_region
    _
  $region29: #{rnn_freq_and_time_forward.9} parent=0 // pred_fallthru
    _

// kernel: rnn_freq_and_time_forward.8
$region0: #{rnn_freq_and_time_forward.8}
  #allocation0 [shape = 'u32[]', space=smem, size = 0x4, offset = 0x4, fixed_abs, tag = 'smem constant byte address 0x4 - core index']
  #allocation1 [shape = 'u32[144,128]{1,0:T(1,128)}', space=vmem, size = 0x12000, scoped, tag = 'internal scratch']
  #allocation2 [shape = 'f32[8,128]{1,0:T(8,128)}', space=vmem, size = 0x1000, scoped, tag = 'scratch operand']
  #allocation3 [shape = 'f32[8,8,128]{2,1,0:T(8,128)}', space=vmem, size = 0x8000, scoped, tag = 'scratch operand']
  %s0 = inlined_call_operand.vmem [shape: bf16[8,8,16], index: 0, kind: input, shape index: {}]
  %s1 = inlined_call_operand.vmem [shape: bf16[16,128], index: 1, kind: input, shape index: {}]
  %s2 = inlined_call_operand.vmem [shape: f32[1,128], index: 2, kind: input, shape index: {}]
  %s3 = inlined_call_operand.vmem [shape: bf16[128,128], index: 3, kind: input, shape index: {}]
  %s4 = inlined_call_operand.vmem [shape: bf16[8,8,128], index: 4, kind: output, shape index: {}]
  %s5 = sld [smem:[#allocation0]]
  $region30: #{rnn_freq_and_time_forward.8} parent=0
    _
  %s7 = ssub.s32 1, %s5
  %s8 = scalar_select 0, %s7, %s5
  // Predicated region
  $region2: #{rnn_freq_and_time_forward.8} parent=0 // pred_check
    _
  $region3: #{rnn_freq_and_time_forward.8} parent=0 // pred_check_branch
    %10 = sbr.rel (0) target = $region5
  $region4: #{rnn_freq_and_time_forward.8} parent=0 // pred_region
    _
  $region5: #{rnn_freq_and_time_forward.8} parent=0 // pred_fallthru
    _
  // Predicated region
  $region6: #{rnn_freq_and_time_forward.8} parent=0 // pred_check
    _
  $region7: #{rnn_freq_and_time_forward.8} parent=0 // pred_check_branch
    %12 = sbr.rel (0) target = $region9
  $region8: #{rnn_freq_and_time_forward.8} parent=0 // pred_region
    _
  $region9: #{rnn_freq_and_time_forward.8} parent=0 // pred_fallthru
    _
  // Predicated region
  $region10: #{rnn_freq_and_time_forward.8} parent=0 // pred_check
    _
  $region11: #{rnn_freq_and_time_forward.8} parent=0 // pred_check_branch
    %14 = sbr.rel (0) target = $region13
  $region12: #{rnn_freq_and_time_forward.8} parent=0 // pred_region
    _
  $region13: #{rnn_freq_and_time_forward.8} parent=0 // pred_fallthru
    _
  // Predicated region
  $region14: #{rnn_freq_and_time_forward.8} parent=0 // pred_check
    _
  $region15: #{rnn_freq_and_time_forward.8} parent=0 // pred_check_branch
    %16 = sbr.rel (0) target = $region17
  $region16: #{rnn_freq_and_time_forward.8} parent=0 // pred_region
    _
  $region17: #{rnn_freq_and_time_forward.8} parent=0 // pred_fallthru
    _
  %p18 = scmp.eq.s32.totalorder 0, 0
  // Predicated region
  $region18: #{rnn_freq_and_time_forward.8} parent=0 // pred_check
    %p19 = pneg %p18
  $region19: #{rnn_freq_and_time_forward.8} parent=0 // pred_check_branch
    %21 = sbr.rel (%p19) target = $region21
  $region20: #{rnn_freq_and_time_forward.8} parent=0 // pred_region
    %22 = vst [vmem:[#allocation2] sm:$0xff] 0.0
  $region21: #{rnn_freq_and_time_forward.8} parent=0 // pred_fallthru
    _
  %v23 = vld [vmem:[%s0] sm:$0xf]
  %v24 = vld [vmem:[%s0 + $0x4] sm:$0xf]
  %v25 = vld [vmem:[%s0 + $0x8] sm:$0xf]
  %v26 = vld [vmem:[%s0 + $0xc] sm:$0xf]
  %v27 = vld [vmem:[%s0 + $0x10] sm:$0xf]
  %v28 = vld [vmem:[%s0 + $0x14] sm:$0xf]
  %v29 = vld [vmem:[%s0 + $0x18] sm:$0xf]
  %v30 = vld [vmem:[%s0 + $0x1c] sm:$0xf]
  %v31 = vld [vmem:[%s1] sm:$0xf]
  %v32 = vld [vmem:[%s1 + $0x4] sm:$0xf]
  %v41 = vunpack.c.l.b16 %v23
  %v42 = vunpack.c.l.b16 %v24
  %v43 = vunpack.c.l.b16 %v25
  %v44 = vunpack.c.l.b16 %v26
  %v45 = vunpack.c.l.b16 %v27
  %v46 = vunpack.c.l.b16 %v28
  %v47 = vunpack.c.l.b16 %v29
  %v48 = vunpack.c.l.b16 %v30
  %v49 = vpack.c.b16 %v42, %v41
  %v50 = vpack.c.b16 %v44, %v43
  %v51 = vpack.c.b16 %v46, %v45
  %v52 = vpack.c.b16 %v48, %v47
  %v55 = vunpack.c.l.b16 %v31
  %v56 = vunpack.c.l.b16 %v32
  %v57 = vpack.c.b16 %v56, %v55
  %vm59 = vcmask 130048
  %v61 = vsel %vm59, %v49, 0
  %v64 = vsel %vm59, %v50, 0
  %v67 = vsel %vm59, %v51, 0
  %v70 = vsel %vm59, %v52, 0
  %72 = vmatprep.subr.bf16.mxu0 0
  %73 = vmatpush1.bf16.msra.mxu0 0
  %74 = vmatprep.subr.bf16.mxu0 0
  %75 = vmatpush1.bf16.msra.mxu0 0
  %76 = vmatprep.subr.bf16.mxu0 0
  %77 = vmatpush1.bf16.msra.mxu0 0
  %78 = vmatprep.subr.bf16.mxu0 0
  %79 = vmatpush1.bf16.msra.mxu0 0
  %80 = vmatprep.subr.bf16.mxu0 0
  %81 = vmatpush1.bf16.msra.mxu0 0
  %82 = vmatprep.subr.bf16.mxu0 0
  %83 = vmatpush1.bf16.msra.mxu0 0
  %84 = vmatprep.subr.bf16.mxu0 0
  %85 = vmatpush1.bf16.msra.mxu0 0
  %86 = vmatprep.subr.bf16.mxu0 0
  %87 = vmatpush1.bf16.msra.mxu0 %v57
  %88 = vmatprep.subr.bf16.mxu0 0
  %89 = vmatpush2.bf16.msra.mxu0 0
  %90 = vmatprep.subr.bf16.mxu0 0
  %91 = vmatpush2.bf16.msra.mxu0 0
  %92 = vmatprep.subr.bf16.mxu0 0
  %93 = vmatpush2.bf16.msra.mxu0 0
  %94 = vmatprep.subr.bf16.mxu0 0
  %95 = vmatpush2.bf16.msra.mxu0 0
  %96 = vmatprep.subr.bf16.mxu0 0
  %97 = vmatpush2.bf16.msra.mxu0 0
  %98 = vmatprep.subr.bf16.mxu0 0
  %99 = vmatpush2.bf16.msra.mxu0 0
  %100 = vmatprep.subr.bf16.mxu0 0
  %101 = vmatpush2.bf16.msra.mxu0 0
  %102 = vmatprep.subr.bf16.mxu0 0
  %103 = vmatpush2.bf16.msra.mxu0 0
  %104 = vmatprep.mubr.bf16.mxu0 0
  %105 = vmatmul.mubr.bf16.gmra.mxu0 %v61
  %v106 = vpop.f32.mrf.mxu0
  %v107 = vadd.f32 0.0, %v106
  %v108 = vpop.f32.mrf.mxu0
  %v109 = vpop.f32.mrf.mxu0
  %v110 = vadd.f32 0.0, %v109
  %v111 = vpop.f32.mrf.mxu0
  %112 = vmatprep.mubr.bf16.mxu0 0
  %113 = vmatmul.mubr.bf16.gmra.mxu0 %v64
  %v114 = vpop.f32.mrf.mxu0
  %v115 = vadd.f32 0.0, %v114
  %v116 = vpop.f32.mrf.mxu0
  %v117 = vpop.f32.mrf.mxu0
  %v118 = vadd.f32 0.0, %v117
  %v119 = vpop.f32.mrf.mxu0
  %120 = vmatprep.mubr.bf16.mxu0 0
  %121 = vmatmul.mubr.bf16.gmra.mxu0 %v67
  %v122 = vpop.f32.mrf.mxu0
  %v123 = vadd.f32 0.0, %v122
  %v124 = vpop.f32.mrf.mxu0
  %v125 = vpop.f32.mrf.mxu0
  %v126 = vadd.f32 0.0, %v125
  %v127 = vpop.f32.mrf.mxu0
  %128 = vmatprep.mubr.bf16.mxu0 0
  %129 = vmatmul.mubr.bf16.gmra.mxu0 %v70
  %v130 = vpop.f32.mrf.mxu0
  %v131 = vadd.f32 0.0, %v130
  %v132 = vpop.f32.mrf.mxu0
  %v133 = vpop.f32.mrf.mxu0
  %v134 = vadd.f32 0.0, %v133
  %v135 = vpop.f32.mrf.mxu0
  %136 = vdwg.mxu0
  %v137 = vld [vmem:[%s2] sm:$0x1]
  %v139 = vlaneseq
  %v140 = vshrl.u32 %v139, 7
  %v141 = vsub.s32 0, %v140
  %v142 = vrot.slane %v137, %v141
  %v144 = vadd.f32 %v107, %v142
  %v145 = vadd.f32 %v110, %v142
  %v146 = vadd.f32 %v115, %v142
  %v147 = vadd.f32 %v118, %v142
  %v148 = vadd.f32 %v123, %v142
  %v149 = vadd.f32 %v126, %v142
  %v150 = vadd.f32 %v131, %v142
  %v151 = vadd.f32 %v134, %v142
  %152 = vst [vmem:[#allocation3] sm:$0xff] %v144
  %153 = vst [vmem:[#allocation3 + $0x8] sm:$0xff] %v145
  %154 = vst [vmem:[#allocation3 + $0x10] sm:$0xff] %v146
  %155 = vst [vmem:[#allocation3 + $0x18] sm:$0xff] %v147
  %156 = vst [vmem:[#allocation3 + $0x20] sm:$0xff] %v148
  %157 = vst [vmem:[#allocation3 + $0x28] sm:$0xff] %v149
  %158 = vst [vmem:[#allocation3 + $0x30] sm:$0xff] %v150
  %159 = vst [vmem:[#allocation3 + $0x38] sm:$0xff] %v151
  %v160 = vld [vmem:[%s3] sm:$0xf]
  %v161 = vld [vmem:[%s3 + $0x4] sm:$0xf]
  %v162 = vld [vmem:[%s3 + $0x8] sm:$0xf]
  %v163 = vld [vmem:[%s3 + $0xc] sm:$0xf]
  %v164 = vld [vmem:[%s3 + $0x10] sm:$0xf]
  %v165 = vld [vmem:[%s3 + $0x14] sm:$0xf]
  %v166 = vld [vmem:[%s3 + $0x18] sm:$0xf]
  %v167 = vld [vmem:[%s3 + $0x1c] sm:$0xf]
  %v168 = vld [vmem:[%s3 + $0x20] sm:$0xf]
  %v169 = vld [vmem:[%s3 + $0x24] sm:$0xf]
  %v170 = vld [vmem:[%s3 + $0x28] sm:$0xf]
  %v171 = vld [vmem:[%s3 + $0x2c] sm:$0xf]
  %v172 = vld [vmem:[%s3 + $0x30] sm:$0xf]
  %v173 = vld [vmem:[%s3 + $0x34] sm:$0xf]
  %v174 = vld [vmem:[%s3 + $0x38] sm:$0xf]
  %v175 = vld [vmem:[%s3 + $0x3c] sm:$0xf]
  %v176 = vld [vmem:[#allocation2] sm:$0xff]
  %v177 = vld [vmem:[#allocation3] sm:$0xff]
  %v178 = vpack.c.bf16 %v176, %v176
  %v195 = vunpack.c.l.b16 %v160
  %v196 = vunpack.c.l.b16 %v161
  %v197 = vunpack.c.l.b16 %v162
  %v198 = vunpack.c.l.b16 %v163
  %v199 = vunpack.c.l.b16 %v164
  %v200 = vunpack.c.l.b16 %v165
  %v201 = vunpack.c.l.b16 %v166
  %v202 = vunpack.c.l.b16 %v167
  %v203 = vunpack.c.l.b16 %v168
  %v204 = vunpack.c.l.b16 %v169
  %v205 = vunpack.c.l.b16 %v170
  %v206 = vunpack.c.l.b16 %v171
  %v207 = vunpack.c.l.b16 %v172
  %v208 = vunpack.c.l.b16 %v173
  %v209 = vunpack.c.l.b16 %v174
  %v210 = vunpack.c.l.b16 %v175
  %v211 = vpack.c.b16 %v196, %v195
  %v212 = vpack.c.b16 %v198, %v197
  %v213 = vpack.c.b16 %v200, %v199
  %v214 = vpack.c.b16 %v202, %v201
  %v215 = vpack.c.b16 %v204, %v203
  %v216 = vpack.c.b16 %v206, %v205
  %v217 = vpack.c.b16 %v208, %v207
  %v218 = vpack.c.b16 %v210, %v209
  %227 = vmatprep.subr.bf16.mxu0 0
  %228 = vmatpush1.bf16.msra.mxu0 %v218
  %229 = vmatprep.subr.bf16.mxu0 0
  %230 = vmatpush1.bf16.msra.mxu0 %v217
  %231 = vmatprep.subr.bf16.mxu0 0
  %232 = vmatpush1.bf16.msra.mxu0 %v216
  %233 = vmatprep.subr.bf16.mxu0 0
  %234 = vmatpush1.bf16.msra.mxu0 %v215
  %235 = vmatprep.subr.bf16.mxu0 0
  %236 = vmatpush1.bf16.msra.mxu0 %v214
  %237 = vmatprep.subr.bf16.mxu0 0
  %238 = vmatpush1.bf16.msra.mxu0 %v213
  %239 = vmatprep.subr.bf16.mxu0 0
  %240 = vmatpush1.bf16.msra.mxu0 %v212
  %241 = vmatprep.subr.bf16.mxu0 0
  %242 = vmatpush1.bf16.msra.mxu0 %v211
  %243 = vmatprep.subr.bf16.mxu0 0
  %244 = vmatpush2.bf16.msra.mxu0 0
  %245 = vmatprep.subr.bf16.mxu0 0
  %246 = vmatpush2.bf16.msra.mxu0 0
  %247 = vmatprep.subr.bf16.mxu0 0
  %248 = vmatpush2.bf16.msra.mxu0 0
  %249 = vmatprep.subr.bf16.mxu0 0
  %250 = vmatpush2.bf16.msra.mxu0 0
  %251 = vmatprep.subr.bf16.mxu0 0
  %252 = vmatpush2.bf16.msra.mxu0 0
  %253 = vmatprep.subr.bf16.mxu0 0
  %254 = vmatpush2.bf16.msra.mxu0 0
  %255 = vmatprep.subr.bf16.mxu0 0
  %256 = vmatpush2.bf16.msra.mxu0 0
  %257 = vmatprep.subr.bf16.mxu0 0
  %258 = vmatpush2.bf16.msra.mxu0 0
  %259 = vmatprep.mubr.bf16.mxu0 0
  %260 = vmatmul.mubr.bf16.gmra.mxu0 %v178
  %v261 = vpop.f32.mrf.mxu0
  %v262 = vadd.f32 0.0, %v261
  %v263 = vpop.f32.mrf.mxu0
  %v264 = vpop.f32.mrf.mxu0
  %v265 = vpop.f32.mrf.mxu0
  %266 = vdwg.mxu0
  %v267 = vadd.f32 %v177, %v262
  %v268 = vtanh.pop %v267
  %v269 = vpack.c.bf16 %v268, %v268
  %270 = vst [vmem:[%s4] sm:$0xf] %v269
  %s271 = scalar_lea.vmem [#allocation3], 8
  %v272 = vld [vmem:[%s271] sm:$0xff]
  %273 = vmatprep.subr.bf16.mxu0 0
  %274 = vmatpush1.bf16.msra.mxu0 %v218
  %275 = vmatprep.subr.bf16.mxu0 0
  %276 = vmatpush1.bf16.msra.mxu0 %v217
  %277 = vmatprep.subr.bf16.mxu0 0
  %278 = vmatpush1.bf16.msra.mxu0 %v216
  %279 = vmatprep.subr.bf16.mxu0 0
  %280 = vmatpush1.bf16.msra.mxu0 %v215
  %281 = vmatprep.subr.bf16.mxu0 0
  %282 = vmatpush1.bf16.msra.mxu0 %v214
  %283 = vmatprep.subr.bf16.mxu0 0
  %284 = vmatpush1.bf16.msra.mxu0 %v213
  %285 = vmatprep.subr.bf16.mxu0 0
  %286 = vmatpush1.bf16.msra.mxu0 %v212
  %287 = vmatprep.subr.bf16.mxu0 0
  %288 = vmatpush1.bf16.msra.mxu0 %v211
  %289 = vmatprep.subr.bf16.mxu0 0
  %290 = vmatpush2.bf16.msra.mxu0 0
  %291 = vmatprep.subr.bf16.mxu0 0
  %292 = vmatpush2.bf16.msra.mxu0 0
  %293 = vmatprep.subr.bf16.mxu0 0
  %294 = vmatpush2.bf16.msra.mxu0 0
  %295 = vmatprep.subr.bf16.mxu0 0
  %296 = vmatpush2.bf16.msra.mxu0 0
  %297 = vmatprep.subr.bf16.mxu0 0
  %298 = vmatpush2.bf16.msra.mxu0 0
  %299 = vmatprep.subr.bf16.mxu0 0
  %300 = vmatpush2.bf16.msra.mxu0 0
  %301 = vmatprep.subr.bf16.mxu0 0
  %302 = vmatpush2.bf16.msra.mxu0 0
  %303 = vmatprep.subr.bf16.mxu0 0
  %304 = vmatpush2.bf16.msra.mxu0 0
  %305 = vmatprep.mubr.bf16.mxu0 0
  %306 = vmatmul.mubr.bf16.gmra.mxu0 %v269
  %v307 = vpop.f32.mrf.mxu0
  %v308 = vadd.f32 0.0, %v307
  %v309 = vpop.f32.mrf.mxu0
  %v310 = vpop.f32.mrf.mxu0
  %v311 = vpop.f32.mrf.mxu0
  %312 = vdwg.mxu0
  %v313 = vadd.f32 %v272, %v308
  %v314 = vtanh.pop %v313
  %v315 = vpack.c.bf16 %v314, %v314
  %s316 = scalar_lea.vmem %s4, 4
  %317 = vst [vmem:[%s316] sm:$0xf] %v315
  %s318 = scalar_lea.vmem [#allocation3], 16
  %v319 = vld [vmem:[%s318] sm:$0xff]
  %320 = vmatprep.subr.bf16.mxu0 0
  %321 = vmatpush1.bf16.msra.mxu0 %v218
  %322 = vmatprep.subr.bf16.mxu0 0
  %323 = vmatpush1.bf16.msra.mxu0 %v217
  %324 = vmatprep.subr.bf16.mxu0 0
  %325 = vmatpush1.bf16.msra.mxu0 %v216
  %326 = vmatprep.subr.bf16.mxu0 0
  %327 = vmatpush1.bf16.msra.mxu0 %v215
  %328 = vmatprep.subr.bf16.mxu0 0
  %329 = vmatpush1.bf16.msra.mxu0 %v214
  %330 = vmatprep.subr.bf16.mxu0 0
  %331 = vmatpush1.bf16.msra.mxu0 %v213
  %332 = vmatprep.subr.bf16.mxu0 0
  %333 = vmatpush1.bf16.msra.mxu0 %v212
  %334 = vmatprep.subr.bf16.mxu0 0
  %335 = vmatpush1.bf16.msra.mxu0 %v211
  %336 = vmatprep.subr.bf16.mxu0 0
  %337 = vmatpush2.bf16.msra.mxu0 0
  %338 = vmatprep.subr.bf16.mxu0 0
  %339 = vmatpush2.bf16.msra.mxu0 0
  %340 = vmatprep.subr.bf16.mxu0 0
  %341 = vmatpush2.bf16.msra.mxu0 0
  %342 = vmatprep.subr.bf16.mxu0 0
  %343 = vmatpush2.bf16.msra.mxu0 0
  %344 = vmatprep.subr.bf16.mxu0 0
  %345 = vmatpush2.bf16.msra.mxu0 0
  %346 = vmatprep.subr.bf16.mxu0 0
  %347 = vmatpush2.bf16.msra.mxu0 0
  %348 = vmatprep.subr.bf16.mxu0 0
  %349 = vmatpush2.bf16.msra.mxu0 0
  %350 = vmatprep.subr.bf16.mxu0 0
  %351 = vmatpush2.bf16.msra.mxu0 0
  %352 = vmatprep.mubr.bf16.mxu0 0
  %353 = vmatmul.mubr.bf16.gmra.mxu0 %v315
  %v354 = vpop.f32.mrf.mxu0
  %v355 = vadd.f32 0.0, %v354
  %v356 = vpop.f32.mrf.mxu0
  %v357 = vpop.f32.mrf.mxu0
  %v358 = vpop.f32.mrf.mxu0
  %359 = vdwg.mxu0
  %v360 = vadd.f32 %v319, %v355
  %v361 = vtanh.pop %v360
  %v362 = vpack.c.bf16 %v361, %v361
  %s363 = scalar_lea.vmem %s4, 8
  %364 = vst [vmem:[%s363] sm:$0xf] %v362
  %s365 = scalar_lea.vmem [#allocation3], 24
  %v366 = vld [vmem:[%s365] sm:$0xff]
  %367 = vmatprep.subr.bf16.mxu0 0
  %368 = vmatpush1.bf16.msra.mxu0 %v218
  %369 = vmatprep.subr.bf16.mxu0 0
  %370 = vmatpush1.bf16.msra.mxu0 %v217
  %371 = vmatprep.subr.bf16.mxu0 0
  %372 = vmatpush1.bf16.msra.mxu0 %v216
  %373 = vmatprep.subr.bf16.mxu0 0
  %374 = vmatpush1.bf16.msra.mxu0 %v215
  %375 = vmatprep.subr.bf16.mxu0 0
  %376 = vmatpush1.bf16.msra.mxu0 %v214
  %377 = vmatprep.subr.bf16.mxu0 0
  %378 = vmatpush1.bf16.msra.mxu0 %v213
  %379 = vmatprep.subr.bf16.mxu0 0
  %380 = vmatpush1.bf16.msra.mxu0 %v212
  %381 = vmatprep.subr.bf16.mxu0 0
  %382 = vmatpush1.bf16.msra.mxu0 %v211
  %383 = vmatprep.subr.bf16.mxu0 0
  %384 = vmatpush2.bf16.msra.mxu0 0
  %385 = vmatprep.subr.bf16.mxu0 0
  %386 = vmatpush2.bf16.msra.mxu0 0
  %387 = vmatprep.subr.bf16.mxu0 0
  %388 = vmatpush2.bf16.msra.mxu0 0
  %389 = vmatprep.subr.bf16.mxu0 0
  %390 = vmatpush2.bf16.msra.mxu0 0
  %391 = vmatprep.subr.bf16.mxu0 0
  %392 = vmatpush2.bf16.msra.mxu0 0
  %393 = vmatprep.subr.bf16.mxu0 0
  %394 = vmatpush2.bf16.msra.mxu0 0
  %395 = vmatprep.subr.bf16.mxu0 0
  %396 = vmatpush2.bf16.msra.mxu0 0
  %397 = vmatprep.subr.bf16.mxu0 0
  %398 = vmatpush2.bf16.msra.mxu0 0
  %399 = vmatprep.mubr.bf16.mxu0 0
  %400 = vmatmul.mubr.bf16.gmra.mxu0 %v362
  %v401 = vpop.f32.mrf.mxu0
  %v402 = vadd.f32 0.0, %v401
  %v403 = vpop.f32.mrf.mxu0
  %v404 = vpop.f32.mrf.mxu0
  %v405 = vpop.f32.mrf.mxu0
  %406 = vdwg.mxu0
  %v407 = vadd.f32 %v366, %v402
  %v408 = vtanh.pop %v407
  %v409 = vpack.c.bf16 %v408, %v408
  %s410 = scalar_lea.vmem %s4, 12
  %411 = vst [vmem:[%s410] sm:$0xf] %v409
  %s412 = scalar_lea.vmem [#allocation3], 32
  %v413 = vld [vmem:[%s412] sm:$0xff]
  %414 = vmatprep.subr.bf16.mxu0 0
  %415 = vmatpush1.bf16.msra.mxu0 %v218
  %416 = vmatprep.subr.bf16.mxu0 0
  %417 = vmatpush1.bf16.msra.mxu0 %v217
  %418 = vmatprep.subr.bf16.mxu0 0
  %419 = vmatpush1.bf16.msra.mxu0 %v216
  %420 = vmatprep.subr.bf16.mxu0 0
  %421 = vmatpush1.bf16.msra.mxu0 %v215
  %422 = vmatprep.subr.bf16.mxu0 0
  %423 = vmatpush1.bf16.msra.mxu0 %v214
  %424 = vmatprep.subr.bf16.mxu0 0
  %425 = vmatpush1.bf16.msra.mxu0 %v213
  %426 = vmatprep.subr.bf16.mxu0 0
  %427 = vmatpush1.bf16.msra.mxu0 %v212
  %428 = vmatprep.subr.bf16.mxu0 0
  %429 = vmatpush1.bf16.msra.mxu0 %v211
  %430 = vmatprep.subr.bf16.mxu0 0
  %431 = vmatpush2.bf16.msra.mxu0 0
  %432 = vmatprep.subr.bf16.mxu0 0
  %433 = vmatpush2.bf16.msra.mxu0 0
  %434 = vmatprep.subr.bf16.mxu0 0
  %435 = vmatpush2.bf16.msra.mxu0 0
  %436 = vmatprep.subr.bf16.mxu0 0
  %437 = vmatpush2.bf16.msra.mxu0 0
  %438 = vmatprep.subr.bf16.mxu0 0
  %439 = vmatpush2.bf16.msra.mxu0 0
  %440 = vmatprep.subr.bf16.mxu0 0
  %441 = vmatpush2.bf16.msra.mxu0 0
  %442 = vmatprep.subr.bf16.mxu0 0
  %443 = vmatpush2.bf16.msra.mxu0 0
  %444 = vmatprep.subr.bf16.mxu0 0
  %445 = vmatpush2.bf16.msra.mxu0 0
  %446 = vmatprep.mubr.bf16.mxu0 0
  %447 = vmatmul.mubr.bf16.gmra.mxu0 %v409
  %v448 = vpop.f32.mrf.mxu0
  %v449 = vadd.f32 0.0, %v448
  %v450 = vpop.f32.mrf.mxu0
  %v451 = vpop.f32.mrf.mxu0
  %v452 = vpop.f32.mrf.mxu0
  %453 = vdwg.mxu0
  %v454 = vadd.f32 %v413, %v449
  %v455 = vtanh.pop %v454
  %v456 = vpack.c.bf16 %v455, %v455
  %s457 = scalar_lea.vmem %s4, 16
  %458 = vst [vmem:[%s457] sm:$0xf] %v456
  %s459 = scalar_lea.vmem [#allocation3], 40
  %v460 = vld [vmem:[%s459] sm:$0xff]
  %461 = vmatprep.subr.bf16.mxu0 0
  %462 = vmatpush1.bf16.msra.mxu0 %v218
  %463 = vmatprep.subr.bf16.mxu0 0
  %464 = vmatpush1.bf16.msra.mxu0 %v217
  %465 = vmatprep.subr.bf16.mxu0 0
  %466 = vmatpush1.bf16.msra.mxu0 %v216
  %467 = vmatprep.subr.bf16.mxu0 0
  %468 = vmatpush1.bf16.msra.mxu0 %v215
  %469 = vmatprep.subr.bf16.mxu0 0
  %470 = vmatpush1.bf16.msra.mxu0 %v214
  %471 = vmatprep.subr.bf16.mxu0 0
  %472 = vmatpush1.bf16.msra.mxu0 %v213
  %473 = vmatprep.subr.bf16.mxu0 0
  %474 = vmatpush1.bf16.msra.mxu0 %v212
  %475 = vmatprep.subr.bf16.mxu0 0
  %476 = vmatpush1.bf16.msra.mxu0 %v211
  %477 = vmatprep.subr.bf16.mxu0 0
  %478 = vmatpush2.bf16.msra.mxu0 0
  %479 = vmatprep.subr.bf16.mxu0 0
  %480 = vmatpush2.bf16.msra.mxu0 0
  %481 = vmatprep.subr.bf16.mxu0 0
  %482 = vmatpush2.bf16.msra.mxu0 0
  %483 = vmatprep.subr.bf16.mxu0 0
  %484 = vmatpush2.bf16.msra.mxu0 0
  %485 = vmatprep.subr.bf16.mxu0 0
  %486 = vmatpush2.bf16.msra.mxu0 0
  %487 = vmatprep.subr.bf16.mxu0 0
  %488 = vmatpush2.bf16.msra.mxu0 0
  %489 = vmatprep.subr.bf16.mxu0 0
  %490 = vmatpush2.bf16.msra.mxu0 0
  %491 = vmatprep.subr.bf16.mxu0 0
  %492 = vmatpush2.bf16.msra.mxu0 0
  %493 = vmatprep.mubr.bf16.mxu0 0
  %494 = vmatmul.mubr.bf16.gmra.mxu0 %v456
  %v495 = vpop.f32.mrf.mxu0
  %v496 = vadd.f32 0.0, %v495
  %v497 = vpop.f32.mrf.mxu0
  %v498 = vpop.f32.mrf.mxu0
  %v499 = vpop.f32.mrf.mxu0
  %500 = vdwg.mxu0
  %v501 = vadd.f32 %v460, %v496
  %v502 = vtanh.pop %v501
  %v503 = vpack.c.bf16 %v502, %v502
  %s504 = scalar_lea.vmem %s4, 20
  %505 = vst [vmem:[%s504] sm:$0xf] %v503
  %s506 = scalar_lea.vmem [#allocation3], 48
  %v507 = vld [vmem:[%s506] sm:$0xff]
  %508 = vmatprep.subr.bf16.mxu0 0
  %509 = vmatpush1.bf16.msra.mxu0 %v218
  %510 = vmatprep.subr.bf16.mxu0 0
  %511 = vmatpush1.bf16.msra.mxu0 %v217
  %512 = vmatprep.subr.bf16.mxu0 0
  %513 = vmatpush1.bf16.msra.mxu0 %v216
  %514 = vmatprep.subr.bf16.mxu0 0
  %515 = vmatpush1.bf16.msra.mxu0 %v215
  %516 = vmatprep.subr.bf16.mxu0 0
  %517 = vmatpush1.bf16.msra.mxu0 %v214
  %518 = vmatprep.subr.bf16.mxu0 0
  %519 = vmatpush1.bf16.msra.mxu0 %v213
  %520 = vmatprep.subr.bf16.mxu0 0
  %521 = vmatpush1.bf16.msra.mxu0 %v212
  %522 = vmatprep.subr.bf16.mxu0 0
  %523 = vmatpush1.bf16.msra.mxu0 %v211
  %524 = vmatprep.subr.bf16.mxu0 0
  %525 = vmatpush2.bf16.msra.mxu0 0
  %526 = vmatprep.subr.bf16.mxu0 0
  %527 = vmatpush2.bf16.msra.mxu0 0
  %528 = vmatprep.subr.bf16.mxu0 0
  %529 = vmatpush2.bf16.msra.mxu0 0
  %530 = vmatprep.subr.bf16.mxu0 0
  %531 = vmatpush2.bf16.msra.mxu0 0
  %532 = vmatprep.subr.bf16.mxu0 0
  %533 = vmatpush2.bf16.msra.mxu0 0
  %534 = vmatprep.subr.bf16.mxu0 0
  %535 = vmatpush2.bf16.msra.mxu0 0
  %536 = vmatprep.subr.bf16.mxu0 0
  %537 = vmatpush2.bf16.msra.mxu0 0
  %538 = vmatprep.subr.bf16.mxu0 0
  %539 = vmatpush2.bf16.msra.mxu0 0
  %540 = vmatprep.mubr.bf16.mxu0 0
  %541 = vmatmul.mubr.bf16.gmra.mxu0 %v503
  %v542 = vpop.f32.mrf.mxu0
  %v543 = vadd.f32 0.0, %v542
  %v544 = vpop.f32.mrf.mxu0
  %v545 = vpop.f32.mrf.mxu0
  %v546 = vpop.f32.mrf.mxu0
  %547 = vdwg.mxu0
  %v548 = vadd.f32 %v507, %v543
  %v549 = vtanh.pop %v548
  %v550 = vpack.c.bf16 %v549, %v549
  %s551 = scalar_lea.vmem %s4, 24
  %552 = vst [vmem:[%s551] sm:$0xf] %v550
  %s553 = scalar_lea.vmem [#allocation3], 56
  %v554 = vld [vmem:[%s553] sm:$0xff]
  %555 = vmatprep.subr.bf16.mxu0 0
  %556 = vmatpush1.bf16.msra.mxu0 %v218
  %557 = vmatprep.subr.bf16.mxu0 0
  %558 = vmatpush1.bf16.msra.mxu0 %v217
  %559 = vmatprep.subr.bf16.mxu0 0
  %560 = vmatpush1.bf16.msra.mxu0 %v216
  %561 = vmatprep.subr.bf16.mxu0 0
  %562 = vmatpush1.bf16.msra.mxu0 %v215
  %563 = vmatprep.subr.bf16.mxu0 0
  %564 = vmatpush1.bf16.msra.mxu0 %v214
  %565 = vmatprep.subr.bf16.mxu0 0
  %566 = vmatpush1.bf16.msra.mxu0 %v213
  %567 = vmatprep.subr.bf16.mxu0 0
  %568 = vmatpush1.bf16.msra.mxu0 %v212
  %569 = vmatprep.subr.bf16.mxu0 0
  %570 = vmatpush1.bf16.msra.mxu0 %v211
  %571 = vmatprep.subr.bf16.mxu0 0
  %572 = vmatpush2.bf16.msra.mxu0 0
  %573 = vmatprep.subr.bf16.mxu0 0
  %574 = vmatpush2.bf16.msra.mxu0 0
  %575 = vmatprep.subr.bf16.mxu0 0
  %576 = vmatpush2.bf16.msra.mxu0 0
  %577 = vmatprep.subr.bf16.mxu0 0
  %578 = vmatpush2.bf16.msra.mxu0 0
  %579 = vmatprep.subr.bf16.mxu0 0
  %580 = vmatpush2.bf16.msra.mxu0 0
  %581 = vmatprep.subr.bf16.mxu0 0
  %582 = vmatpush2.bf16.msra.mxu0 0
  %583 = vmatprep.subr.bf16.mxu0 0
  %584 = vmatpush2.bf16.msra.mxu0 0
  %585 = vmatprep.subr.bf16.mxu0 0
  %586 = vmatpush2.bf16.msra.mxu0 0
  %587 = vmatprep.mubr.bf16.mxu0 0
  %588 = vmatmul.mubr.bf16.gmra.mxu0 %v550
  %v589 = vpop.f32.mrf.mxu0
  %v590 = vadd.f32 0.0, %v589
  %v591 = vpop.f32.mrf.mxu0
  %v592 = vpop.f32.mrf.mxu0
  %v593 = vpop.f32.mrf.mxu0
  %594 = vdwg.mxu0
  %v595 = vadd.f32 %v554, %v590
  %v596 = vtanh.pop %v595
  %v597 = vpack.c.bf16 %v596, %v596
  %s598 = scalar_lea.vmem %s4, 28
  %599 = vst [vmem:[%s598] sm:$0xf] %v597
  %600 = vst [vmem:[#allocation2] sm:$0xff] %v596
  // Predicated region
  $region22: #{rnn_freq_and_time_forward.8} parent=0 // pred_check
    _
  $region23: #{rnn_freq_and_time_forward.8} parent=0 // pred_check_branch
    %602 = sbr.rel (0) target = $region25
  $region24: #{rnn_freq_and_time_forward.8} parent=0 // pred_region
    _
  $region25: #{rnn_freq_and_time_forward.8} parent=0 // pred_fallthru
    _
  // Predicated region
  $region26: #{rnn_freq_and_time_forward.8} parent=0 // pred_check
    _
  $region27: #{rnn_freq_and_time_forward.8} parent=0 // pred_check_branch
    %604 = sbr.rel (0) target = $region29
  $region28: #{rnn_freq_and_time_forward.8} parent=0 // pred_region
    _
  $region29: #{rnn_freq_and_time_forward.8} parent=0 // pred_fallthru
    _

</llo_original>
